<compile_context>
chip_gen: v7x
topology: tpu7x:2x2x1
jax: 0.10.0
libtpu: 0.0.40
codegen_flags: <defaults>
</compile_context>

<pallas_src>
import jax
import jax.numpy as jnp
from jax.experimental import pallas as pl
from jax.experimental.pallas import tpu as pltpu


# ---------------------------------------------------------------------------
# Fused Pallas kernel: one grid step == one view
# ---------------------------------------------------------------------------

def _vpn_kernel(x_ref, enc_w_ref, enc_b_ref, w1_ref, b1_ref, w2_ref, b2_ref,
                dec_w_ref, dec_b_ref, o_ref, acc_ref):
    """Per-view fused forward step.

    x_ref:     (B, 1, C, P)   raw pixels of view v, pixels-last (P = H*W)
    enc_w_ref: (Cenc, C)      1x1-conv encoder weight (out-channels first)
    enc_b_ref: (Cenc, 1)      encoder bias (broadcast over pixels)
    w1_ref:    (1, D, 4D)     per-view Linear-1 weight (bf16), D = P
    b1_ref:    (1, 1, 4D)     per-view Linear-1 bias (f32)
    w2_ref:    (1, 4D, D)     per-view Linear-2 weight (bf16)
    b2_ref:    (1, 1, D)      per-view Linear-2 bias (f32)
    dec_w_ref: (ncls, Cenc)   1x1-conv decoder weight
    dec_b_ref: (ncls, 1)      decoder bias
    o_ref:     (B, ncls, P)   output, resident across the view axis
    acc_ref:   (B*Cenc, P)    f32 VMEM accumulator for the view-sum
    """
    v = pl.program_id(0)
    nv = pl.num_programs(0)
    B = x_ref.shape[0]
    Cenc = enc_w_ref.shape[0]

    @pl.when(v == 0)
    def _():
        acc_ref[...] = jnp.zeros_like(acc_ref)

    # ---- encoder: 1x1 conv + ReLU, pixels-last (lane-dense, no transposes) ----
    enc_w = enc_w_ref[...]                                        # (Cenc, C)
    enc_b = enc_b_ref[...]                                        # (Cenc, 1)
    fe = []
    for b in range(B):                                            # B is tiny & static
        xb = x_ref[b, 0]                                          # (C, P)
        fb = jnp.dot(enc_w, xb, preferred_element_type=jnp.float32)
        fe.append(jnp.maximum(fb + enc_b, 0.0))                   # (Cenc, P)
    feat = jnp.concatenate(fe, axis=0)                            # (B*Cenc, P) == (M, D)

    # ---- per-view MLP D -> 4D -> D, ReLU after each Linear, summed over views ----
    # Weights live in HBM as bf16 (halves DMA bytes); upcast in VMEM and keep
    # all matmul/elementwise math in f32 (v5e-friendly epilogue).
    w1 = w1_ref[0].astype(jnp.float32)                            # (D, 4D)
    w2 = w2_ref[0].astype(jnp.float32)                            # (4D, D)
    h = jnp.dot(feat, w1, preferred_element_type=jnp.float32)     # (M, 4D)
    h = jnp.maximum(h + b1_ref[0], 0.0)
    y = jnp.dot(h, w2, preferred_element_type=jnp.float32)        # (M, D)
    y = jnp.maximum(y + b2_ref[0], 0.0)
    acc_ref[...] += y

    # ---- decoder: 1x1 conv fused into the last-view epilogue ----
    @pl.when(v == nv - 1)
    def _():
        dec_w = dec_w_ref[...]                                    # (ncls, Cenc)
        dec_b = dec_b_ref[...]                                    # (ncls, 1)
        for b in range(B):
            cb = acc_ref[b * Cenc:(b + 1) * Cenc, :]              # (Cenc, P)
            ob = jnp.dot(dec_w, cb, preferred_element_type=jnp.float32)
            o_ref[b] = (ob + dec_b).astype(o_ref.dtype)           # (ncls, P)


# ---------------------------------------------------------------------------
# Parameters + forward glue
# ---------------------------------------------------------------------------

def init_params(key, in_ch, enc_ch, num_classes, dim1, dim2, num_views):
    D = dim1 * dim2
    H4 = 4 * D
    ks = jax.random.split(key, 8)
    s = 0.05
    return {
        # encoder 1x1 conv: weight (Cout, Cin), bias (Cout,)
        "enc_w": s * jax.random.normal(ks[0], (enc_ch, in_ch), jnp.float32),
        "enc_b": s * jax.random.normal(ks[1], (enc_ch,), jnp.float32),
        # TransformModule: per-view Linear(D,4D) + ReLU + Linear(4D,D) + ReLU
        # Big weights stored in bf16 (DMA-bound kernel); biases stay f32.
        "t_w1": (s * jax.random.normal(ks[2], (num_views, D, H4), jnp.float32)
                 ).astype(jnp.bfloat16),
        "t_b1": s * jax.random.normal(ks[3], (num_views, 1, H4), jnp.float32),
        "t_w2": (s * jax.random.normal(ks[4], (num_views, H4, D), jnp.float32)
                 ).astype(jnp.bfloat16),
        "t_b2": s * jax.random.normal(ks[5], (num_views, 1, D), jnp.float32),
        # decoder 1x1 conv: weight (nclass, Cenc), bias (nclass,)
        "dec_w": s * jax.random.normal(ks[6], (num_classes, enc_ch), jnp.float32),
        "dec_b": s * jax.random.normal(ks[7], (num_classes,), jnp.float32),
    }


def vpn_forward(params, x):
    """x: (B, V, C, H, W) float32 (NCHW per view, like the PyTorch module)."""
    B, V, C, H, W = x.shape
    P = H * W
    Cenc = params["enc_w"].shape[0]
    ncls = params["dec_w"].shape[0]
    D, H4 = params["t_w1"].shape[1], params["t_w1"].shape[2]
    assert D == P, "TransformModule expects dim1*dim2 == H*W"

    xf = x.reshape(B, V, C, P)                       # pure reshape, stays NCHW
    enc_b = params["enc_b"].reshape(Cenc, 1)
    dec_b = params["dec_b"].reshape(ncls, 1)

    out = pl.pallas_call(
        _vpn_kernel,
        out_shape=jax.ShapeDtypeStruct((B, ncls, P), jnp.float32),
        grid_spec=pltpu.PrefetchScalarGridSpec(
            num_scalar_prefetch=0,
            grid=(V,),
            in_specs=[
                pl.BlockSpec((B, 1, C, P), lambda v: (0, v, 0, 0)),   # x (view v)
                pl.BlockSpec((Cenc, C),    lambda v: (0, 0)),         # enc_w
                pl.BlockSpec((Cenc, 1),    lambda v: (0, 0)),         # enc_b
                pl.BlockSpec((1, D, H4),   lambda v: (v, 0, 0)),      # t_w1[v] (bf16)
                pl.BlockSpec((1, 1, H4),   lambda v: (v, 0, 0)),      # t_b1[v]
                pl.BlockSpec((1, H4, D),   lambda v: (v, 0, 0)),      # t_w2[v] (bf16)
                pl.BlockSpec((1, 1, D),    lambda v: (v, 0, 0)),      # t_b2[v]
                pl.BlockSpec((ncls, Cenc), lambda v: (0, 0)),         # dec_w
                pl.BlockSpec((ncls, 1),    lambda v: (0, 0)),         # dec_b
            ],
            out_specs=pl.BlockSpec((B, ncls, P), lambda v: (0, 0, 0)),
            scratch_shapes=[pltpu.VMEM((B * Cenc, P), jnp.float32)],
        ),
        compiler_params=pltpu.CompilerParams(
            dimension_semantics=("arbitrary",)),      # view axis is a reduction
    )(xf, params["enc_w"], enc_b,
      params["t_w1"], params["t_b1"], params["t_w2"], params["t_b2"],
      params["dec_w"], dec_b)

    return out.reshape(B, ncls, H, W)                 # (B, nclass, H, W), NCHW


def vpn_forward_reference(params, x):
    """Pure-JAX reference of the same forward pass (for verification)."""
    B, V, C, H, W = x.shape
    Cenc = params["enc_w"].shape[0]
    ncls = params["dec_w"].shape[0]
    P = H * W
    xf = x.reshape(B, V, C, P)
    # encoder: 1x1 conv + ReLU
    fe = jnp.einsum("oc,bvcp->bvop", params["enc_w"], xf)
    fe = jnp.maximum(fe + params["enc_b"][None, None, :, None], 0.0)   # (B,V,Cenc,P)
    # transform: per-view MLP summed over views
    acc = jnp.zeros((B * Cenc, P), jnp.float32)
    for v in range(V):
        xv = fe[:, v].reshape(B * Cenc, P)
        w1 = params["t_w1"][v].astype(jnp.float32)
        w2 = params["t_w2"][v].astype(jnp.float32)
        h = jnp.maximum(xv @ w1 + params["t_b1"][v], 0.0)
        y = jnp.maximum(h @ w2 + params["t_b2"][v], 0.0)
        acc = acc + y
    comb = acc.reshape(B, Cenc, P)
    # decoder: 1x1 conv (no activation)
    out = jnp.einsum("oc,bcp->bop", params["dec_w"], comb)
    out = out + params["dec_b"][None, :, None]
    return out.reshape(B, ncls, H, W)


if __name__ == "__main__":
    B, V, C, H, W = 2, 6, 4, 16, 16          # dim1 = H = 16, dim2 = W = 16
    enc_ch, num_classes = 8, 4

    root = jax.random.PRNGKey(0)
    k_params, k_x = jax.random.split(root)
    params = init_params(k_params, C, enc_ch, num_classes,
                         dim1=H, dim2=W, num_views=V)
    x = jax.random.normal(k_x, (B, V, C, H, W), jnp.float32)

    out = jax.jit(vpn_forward)(params, x)
    out = jax.block_until_ready(out)
    assert out.shape == (B, num_classes, H, W), out.shape

    ref = vpn_forward_reference(params, x)
    assert jnp.allclose(out, ref, rtol=1e-3, atol=1e-3), \
        float(jnp.max(jnp.abs(out - ref)))

    print("KERNEL_OK")
</pallas_src>

<mosaic_0001>
module attributes {stable_mosaic.version = 11 : i64} {
  func.func @_vpn_kernel(%arg0: i32, %arg1: memref<2x1x4x256xf32, #tpu.memory_space<vmem>>, %arg2: memref<8x4xf32, #tpu.memory_space<vmem>>, %arg3: memref<8x1xf32, #tpu.memory_space<vmem>>, %arg4: memref<1x256x1024xbf16, #tpu.memory_space<vmem>>, %arg5: memref<1x1x1024xf32, #tpu.memory_space<vmem>>, %arg6: memref<1x1024x256xbf16, #tpu.memory_space<vmem>>, %arg7: memref<1x1x256xf32, #tpu.memory_space<vmem>>, %arg8: memref<4x8xf32, #tpu.memory_space<vmem>>, %arg9: memref<4x1xf32, #tpu.memory_space<vmem>>, %arg10: memref<2x4x256xf32, #tpu.memory_space<vmem>>, %arg11: memref<16x256xf32, #tpu.memory_space<vmem>>) attributes {dimension_semantics = [#tpu.dimension_semantics<arbitrary>], iteration_bounds = array<i64: 6>, scalar_prefetch = 0 : i64, scratch_operands = 1 : i64, tpu.core_type = #tpu.core_type<tc>, window_params = [{transform_indices = @transform_0, window_bounds = array<i64: 2, 1, 4, 256>}, {pipeline_mode = #tpu.pipeline_mode<synchronous>, transform_indices = @transform_1, window_bounds = array<i64: 8, 4>}, {pipeline_mode = #tpu.pipeline_mode<synchronous>, transform_indices = @transform_2, window_bounds = array<i64: 8, 1>}, {transform_indices = @transform_3, window_bounds = array<i64: 1, 256, 1024>}, {transform_indices = @transform_4, window_bounds = array<i64: 1, 1, 1024>}, {transform_indices = @transform_5, window_bounds = array<i64: 1, 1024, 256>}, {transform_indices = @transform_6, window_bounds = array<i64: 1, 1, 256>}, {pipeline_mode = #tpu.pipeline_mode<synchronous>, transform_indices = @transform_7, window_bounds = array<i64: 4, 8>}, {pipeline_mode = #tpu.pipeline_mode<synchronous>, transform_indices = @transform_8, window_bounds = array<i64: 4, 1>}, {pipeline_mode = #tpu.pipeline_mode<synchronous>, transform_indices = @transform_9, window_bounds = array<i64: 2, 4, 256>}]} {
    %c0_i32 = arith.constant 0 : i32
    %0 = arith.cmpi eq, %arg0, %c0_i32 : i32
    %1 = arith.extui %0 : i1 to i32
    %c0_i32_0 = arith.constant 0 : i32
    %2 = arith.cmpi ne, %1, %c0_i32_0 : i32
    scf.if %2 {
      %cst_35 = arith.constant 0.000000e+00 : f32
      %46 = vector.broadcast %cst_35 : f32 to vector<16x256xf32>
      %c0_36 = arith.constant 0 : index
      %c0_37 = arith.constant 0 : index
      %47 = vector.load %arg11[%c0_36, %c0_37] : memref<16x256xf32, #tpu.memory_space<vmem>>, vector<16x256xf32>
      tpu.vector_store %arg11[%c0_36, %c0_37], %46 {strides = array<i32>} : memref<16x256xf32, #tpu.memory_space<vmem>>, vector<16x256xf32>,
    } else {
    }
    %c0 = arith.constant 0 : index
    %c0_1 = arith.constant 0 : index
    %3 = vector.load %arg2[%c0, %c0_1] : memref<8x4xf32, #tpu.memory_space<vmem>>, vector<8x4xf32>
    %c0_2 = arith.constant 0 : index
    %c0_3 = arith.constant 0 : index
    %4 = vector.load %arg3[%c0_2, %c0_3] : memref<8x1xf32, #tpu.memory_space<vmem>>, vector<8x1xf32>
    %c0_4 = arith.constant 0 : index
    %c0_5 = arith.constant 0 : index
    %c0_6 = arith.constant 0 : index
    %c0_7 = arith.constant 0 : index
    %5 = vector.load %arg1[%c0_4, %c0_5, %c0_6, %c0_7] : memref<2x1x4x256xf32, #tpu.memory_space<vmem>>, vector<1x1x4x256xf32>
    %6 = vector.shape_cast %5 : vector<1x1x4x256xf32> to vector<4x256xf32>
    %cst = arith.constant dense<0.000000e+00> : vector<8x256xf32>
    %7 = tpu.matmul %3, %6, %cst {dimension_numbers = #tpu.dot_dimension_numbers<[1], [0], [0], [1], [0, 0, 1, 1], [], []>} : vector<8x4xf32>, vector<4x256xf32>, vector<8x256xf32> -> vector<8x256xf32>
    %8 = vector.broadcast %4 : vector<8x1xf32> to vector<8x256xf32>
    %9 = arith.addf %7, %8 : vector<8x256xf32>
    %cst_8 = arith.constant 0.000000e+00 : f32
    %10 = vector.broadcast %cst_8 : f32 to vector<8x256xf32>
    %11 = arith.maximumf %9, %10 : vector<8x256xf32>
    %c1 = arith.constant 1 : index
    %c0_9 = arith.constant 0 : index
    %c0_10 = arith.constant 0 : index
    %c0_11 = arith.constant 0 : index
    %12 = vector.load %arg1[%c1, %c0_9, %c0_10, %c0_11] : memref<2x1x4x256xf32, #tpu.memory_space<vmem>>, vector<1x1x4x256xf32>
    %13 = vector.shape_cast %12 : vector<1x1x4x256xf32> to vector<4x256xf32>
    %cst_12 = arith.constant dense<0.000000e+00> : vector<8x256xf32>
    %14 = tpu.matmul %3, %13, %cst_12 {dimension_numbers = #tpu.dot_dimension_numbers<[1], [0], [0], [1], [0, 0, 1, 1], [], []>} : vector<8x4xf32>, vector<4x256xf32>, vector<8x256xf32> -> vector<8x256xf32>
    %15 = vector.broadcast %4 : vector<8x1xf32> to vector<8x256xf32>
    %16 = arith.addf %14, %15 : vector<8x256xf32>
    %cst_13 = arith.constant 0.000000e+00 : f32
    %17 = vector.broadcast %cst_13 : f32 to vector<8x256xf32>
    %18 = arith.maximumf %16, %17 : vector<8x256xf32>
    %19 = tpu.concatenate %11, %18 in 0 : vector<8x256xf32>, vector<8x256xf32> -> vector<16x256xf32>
    %c0_14 = arith.constant 0 : index
    %c0_15 = arith.constant 0 : index
    %c0_16 = arith.constant 0 : index
    %20 = vector.load %arg4[%c0_14, %c0_15, %c0_16] : memref<1x256x1024xbf16, #tpu.memory_space<vmem>>, vector<1x256x1024xbf16>
    %21 = vector.shape_cast %20 : vector<1x256x1024xbf16> to vector<256x1024xbf16>
    %22 = arith.extf %21 : vector<256x1024xbf16> to vector<256x1024xf32>
    %c0_17 = arith.constant 0 : index
    %c0_18 = arith.constant 0 : index
    %c0_19 = arith.constant 0 : index
    %23 = vector.load %arg6[%c0_17, %c0_18, %c0_19] : memref<1x1024x256xbf16, #tpu.memory_space<vmem>>, vector<1x1024x256xbf16>
    %24 = vector.shape_cast %23 : vector<1x1024x256xbf16> to vector<1024x256xbf16>
    %25 = arith.extf %24 : vector<1024x256xbf16> to vector<1024x256xf32>
    %cst_20 = arith.constant dense<0.000000e+00> : vector<16x1024xf32>
    %26 = tpu.matmul %19, %22, %cst_20 {dimension_numbers = #tpu.dot_dimension_numbers<[1], [0], [0], [1], [0, 0, 1, 1], [], []>} : vector<16x256xf32>, vector<256x1024xf32>, vector<16x1024xf32> -> vector<16x1024xf32>
    %c0_21 = arith.constant 0 : index
    %c0_22 = arith.constant 0 : index
    %c0_23 = arith.constant 0 : index
    %27 = vector.load %arg5[%c0_21, %c0_22, %c0_23] : memref<1x1x1024xf32, #tpu.memory_space<vmem>>, vector<1x1x1024xf32>
    %28 = vector.shape_cast %27 : vector<1x1x1024xf32> to vector<1x1024xf32>
    %29 = vector.broadcast %28 : vector<1x1024xf32> to vector<16x1024xf32>
    %30 = arith.addf %26, %29 : vector<16x1024xf32>
    %cst_24 = arith.constant 0.000000e+00 : f32
    %31 = vector.broadcast %cst_24 : f32 to vector<16x1024xf32>
    %32 = arith.maximumf %30, %31 : vector<16x1024xf32>
    %cst_25 = arith.constant dense<0.000000e+00> : vector<16x256xf32>
    %33 = tpu.matmul %32, %25, %cst_25 {dimension_numbers = #tpu.dot_dimension_numbers<[1], [0], [0], [1], [0, 0, 1, 1], [], []>} : vector<16x1024xf32>, vector<1024x256xf32>, vector<16x256xf32> -> vector<16x256xf32>
    %c0_26 = arith.constant 0 : index
    %c0_27 = arith.constant 0 : index
    %c0_28 = arith.constant 0 : index
    %34 = vector.load %arg7[%c0_26, %c0_27, %c0_28] : memref<1x1x256xf32, #tpu.memory_space<vmem>>, vector<1x1x256xf32>
    %35 = vector.shape_cast %34 : vector<1x1x256xf32> to vector<1x256xf32>
    %36 = vector.broadcast %35 : vector<1x256xf32> to vector<16x256xf32>
    %37 = arith.addf %33, %36 : vector<16x256xf32>
    %cst_29 = arith.constant 0.000000e+00 : f32
    %38 = vector.broadcast %cst_29 : f32 to vector<16x256xf32>
    %39 = arith.maximumf %37, %38 : vector<16x256xf32>
    %c0_30 = arith.constant 0 : index
    %c0_31 = arith.constant 0 : index
    %40 = vector.load %arg11[%c0_30, %c0_31] : memref<16x256xf32, #tpu.memory_space<vmem>>, vector<16x256xf32>
    %41 = arith.addf %40, %39 : vector<16x256xf32>
    %c0_32 = arith.constant 0 : index
    %c0_33 = arith.constant 0 : index
    %42 = vector.load %arg11[%c0_32, %c0_33] : memref<16x256xf32, #tpu.memory_space<vmem>>, vector<16x256xf32>
    tpu.vector_store %arg11[%c0_32, %c0_33], %41 {strides = array<i32>} : memref<16x256xf32, #tpu.memory_space<vmem>>, vector<16x256xf32>,
    %c5_i32 = arith.constant 5 : i32
    %43 = arith.cmpi eq, %arg0, %c5_i32 : i32
    %44 = arith.extui %43 : i1 to i32
    %c0_i32_34 = arith.constant 0 : i32
    %45 = arith.cmpi ne, %44, %c0_i32_34 : i32
    scf.if %45 {
      %c0_35 = arith.constant 0 : index
      %c0_36 = arith.constant 0 : index
      %46 = vector.load %arg8[%c0_35, %c0_36] : memref<4x8xf32, #tpu.memory_space<vmem>>, vector<4x8xf32>
      %c0_37 = arith.constant 0 : index
      %c0_38 = arith.constant 0 : index
      %47 = vector.load %arg9[%c0_37, %c0_38] : memref<4x1xf32, #tpu.memory_space<vmem>>, vector<4x1xf32>
      %c0_39 = arith.constant 0 : index
      %c0_40 = arith.constant 0 : index
      %48 = vector.load %arg11[%c0_39, %c0_40] : memref<16x256xf32, #tpu.memory_space<vmem>>, vector<8x256xf32>
      %cst_41 = arith.constant dense<0.000000e+00> : vector<4x256xf32>
      %49 = tpu.matmul %46, %48, %cst_41 {dimension_numbers = #tpu.dot_dimension_numbers<[1], [0], [0], [1], [0, 0, 1, 1], [], []>} : vector<4x8xf32>, vector<8x256xf32>, vector<4x256xf32> -> vector<4x256xf32>
      %50 = vector.broadcast %47 : vector<4x1xf32> to vector<4x256xf32>
      %51 = arith.addf %49, %50 : vector<4x256xf32>
      %c0_42 = arith.constant 0 : index
      %c0_43 = arith.constant 0 : index
      %c0_44 = arith.constant 0 : index
      %52 = vector.load %arg10[%c0_42, %c0_43, %c0_44] : memref<2x4x256xf32, #tpu.memory_space<vmem>>, vector<1x4x256xf32>
      %53 = vector.shape_cast %52 : vector<1x4x256xf32> to vector<4x256xf32>
      %54 = vector.shape_cast %51 : vector<4x256xf32> to vector<1x4x256xf32>
      tpu.vector_store %arg10[%c0_42, %c0_43, %c0_44], %54 {strides = array<i32>} : memref<2x4x256xf32, #tpu.memory_space<vmem>>, vector<1x4x256xf32>,
      %c8 = arith.constant 8 : index
      %c0_45 = arith.constant 0 : index
      %55 = vector.load %arg11[%c8, %c0_45] : memref<16x256xf32, #tpu.memory_space<vmem>>, vector<8x256xf32>
      %cst_46 = arith.constant dense<0.000000e+00> : vector<4x256xf32>
      %56 = tpu.matmul %46, %55, %cst_46 {dimension_numbers = #tpu.dot_dimension_numbers<[1], [0], [0], [1], [0, 0, 1, 1], [], []>} : vector<4x8xf32>, vector<8x256xf32>, vector<4x256xf32> -> vector<4x256xf32>
      %57 = vector.broadcast %47 : vector<4x1xf32> to vector<4x256xf32>
      %58 = arith.addf %56, %57 : vector<4x256xf32>
      %c1_47 = arith.constant 1 : index
      %c0_48 = arith.constant 0 : index
      %c0_49 = arith.constant 0 : index
      %59 = vector.load %arg10[%c1_47, %c0_48, %c0_49] : memref<2x4x256xf32, #tpu.memory_space<vmem>>, vector<1x4x256xf32>
      %60 = vector.shape_cast %59 : vector<1x4x256xf32> to vector<4x256xf32>
      %61 = vector.shape_cast %58 : vector<4x256xf32> to vector<1x4x256xf32>
      tpu.vector_store %arg10[%c1_47, %c0_48, %c0_49], %61 {strides = array<i32>} : memref<2x4x256xf32, #tpu.memory_space<vmem>>, vector<1x4x256xf32>,
    } else {
    }
    return
  }
  func.func @transform_0(%arg0: i32) -> (i32, i32, i32, i32) {
    %c0_i32 = arith.constant 0 : i32
    %c0_i32_0 = arith.constant 0 : i32
    %c0_i32_1 = arith.constant 0 : i32
    %c0_i32_2 = arith.constant 0 : i32
    return %c0_i32, %arg0, %c0_i32_0, %c0_i32_1 : i32, i32, i32, i32
  }
  func.func @transform_1(%arg0: i32) -> (i32, i32) {
    %c0_i32 = arith.constant 0 : i32
    %c0_i32_0 = arith.constant 0 : i32
    %c0_i32_1 = arith.constant 0 : i32
    return %c0_i32, %c0_i32_0 : i32, i32
  }
  func.func @transform_2(%arg0: i32) -> (i32, i32) {
    %c0_i32 = arith.constant 0 : i32
    %c0_i32_0 = arith.constant 0 : i32
    %c0_i32_1 = arith.constant 0 : i32
    return %c0_i32, %c0_i32_0 : i32, i32
  }
  func.func @transform_3(%arg0: i32) -> (i32, i32, i32) {
    %c0_i32 = arith.constant 0 : i32
    %c0_i32_0 = arith.constant 0 : i32
    %c0_i32_1 = arith.constant 0 : i32
    return %arg0, %c0_i32, %c0_i32_0 : i32, i32, i32
  }
  func.func @transform_4(%arg0: i32) -> (i32, i32, i32) {
    %c0_i32 = arith.constant 0 : i32
    %c0_i32_0 = arith.constant 0 : i32
    %c0_i32_1 = arith.constant 0 : i32
    return %arg0, %c0_i32, %c0_i32_0 : i32, i32, i32
  }
  func.func @transform_5(%arg0: i32) -> (i32, i32, i32) {
    %c0_i32 = arith.constant 0 : i32
    %c0_i32_0 = arith.constant 0 : i32
    %c0_i32_1 = arith.constant 0 : i32
    return %arg0, %c0_i32, %c0_i32_0 : i32, i32, i32
  }
  func.func @transform_6(%arg0: i32) -> (i32, i32, i32) {
    %c0_i32 = arith.constant 0 : i32
    %c0_i32_0 = arith.constant 0 : i32
    %c0_i32_1 = arith.constant 0 : i32
    return %arg0, %c0_i32, %c0_i32_0 : i32, i32, i32
  }
  func.func @transform_7(%arg0: i32) -> (i32, i32) {
    %c0_i32 = arith.constant 0 : i32
    %c0_i32_0 = arith.constant 0 : i32
    %c0_i32_1 = arith.constant 0 : i32
    return %c0_i32, %c0_i32_0 : i32, i32
  }
  func.func @transform_8(%arg0: i32) -> (i32, i32) {
    %c0_i32 = arith.constant 0 : i32
    %c0_i32_0 = arith.constant 0 : i32
    %c0_i32_1 = arith.constant 0 : i32
    return %c0_i32, %c0_i32_0 : i32, i32
  }
  func.func @transform_9(%arg0: i32) -> (i32, i32, i32) {
    %c0_i32 = arith.constant 0 : i32
    %c0_i32_0 = arith.constant 0 : i32
    %c0_i32_1 = arith.constant 0 : i32
    %c0_i32_2 = arith.constant 0 : i32
    return %c0_i32, %c0_i32_0, %c0_i32_1 : i32, i32, i32
  }
}

</mosaic_0001>

<llo_original>
// kernel: vpn_forward.1
$region0: #{vpn_forward.1}
  #allocation0 [shape = 'u32[]', space=smem, size = 0x4, offset = 0x4, fixed_abs, tag = 'smem constant byte address 0x4 - core index']
  #allocation1 [shape = 'u32[144,128]{1,0:T(1,128)}', space=vmem, size = 0x12000, scoped, tag = 'internal scratch']
  #allocation2 [shape = 'f32[16,256]{1,0:T(8,128)}', space=vmem, size = 0x4000, scoped, tag = 'scratch operand']
  %s0 = inlined_call_operand.vmem [shape: f32[2,6,4,256], index: 0, kind: input, shape index: {}]
  %s1 = inlined_call_operand.vmem [shape: f32[8,4], index: 1, kind: input, shape index: {}]
  %s2 = inlined_call_operand.vmem [shape: f32[8,1], index: 2, kind: input, shape index: {}]
  %s3 = inlined_call_operand.hbm [shape: bf16[6,256,1024], index: 3, kind: input, shape index: {}]
  %s4 = inlined_call_operand.hbm [shape: f32[6,1,1024], index: 4, kind: input, shape index: {}]
  %s5 = inlined_call_operand.hbm [shape: bf16[6,1024,256], index: 5, kind: input, shape index: {}]
  %s6 = inlined_call_operand.hbm [shape: f32[6,1,256], index: 6, kind: input, shape index: {}]
  %s7 = inlined_call_operand.hbm [shape: f32[4,8], index: 7, kind: input, shape index: {}]
  %s8 = inlined_call_operand.vmem [shape: f32[4,1], index: 8, kind: input, shape index: {}]
  %s9 = inlined_call_operand.vmem [shape: f32[2,4,256], index: 9, kind: output, shape index: {}]
  %s10 = sld [smem:[#allocation0]]
  $region135: #{vpn_forward.1} parent=0
    _
  %s12 = ssub.s32 1, %s10
  %s13 = scalar_select 0, %s12, %s10
  $region1: #{vpn_forward.1} parent=0
    #allocation3 [shape = 'u8[16384]{0}', space=vmem, size = 0x4000, scoped, tag = 'input window, operand 0']
    #allocation4 [shape = 'u8[1048576]{0}', space=vmem, size = 0x100000, scoped, tag = 'input window, operand 3']
    #allocation5 [shape = 's32[2]{0}', space=sflag, size = 0x8, scoped, tag = 'scoped memory for vpn_forward.1']
    #allocation6 [shape = 'u8[8192]{0}', space=vmem, size = 0x2000, scoped, tag = 'input window, operand 4']
    #allocation7 [shape = 's32[2]{0}', space=sflag, size = 0x8, scoped, tag = 'scoped memory for vpn_forward.1']
    #allocation8 [shape = 'u8[1048576]{0}', space=vmem, size = 0x100000, scoped, tag = 'input window, operand 5']
    #allocation9 [shape = 'u8[2048]{0}', space=vmem, size = 0x800, scoped, tag = 'input window, operand 6']
    #allocation10 [shape = 's32[2]{0}', space=sflag, size = 0x8, scoped, tag = 'scoped memory for vpn_forward.1']
    #allocation11 [shape = 'u8[2048]{0}', space=vmem, size = 0x800, scoped, tag = 'input window, operand 7, single buffered']
    %14 = vsyncpa [#allocation5], 0
    %s15 = scalar_lea.sflag [#allocation5], 1
    %16 = vsyncpa %s15, 0
    %17 = vsyncpa [#allocation7], 0
    %s18 = scalar_lea.sflag [#allocation7], 1
    %19 = vsyncpa %s18, 0
    %20 = vsyncpa [#allocation10], 0
    %s21 = scalar_lea.sflag [#allocation10], 1
    %22 = vsyncpa %s21, 0
    loop: start=0, step=1, limit=8
    $region2: #{vpn_forward.1} parent=1 // loop_pre_header
      _
    $region3: #{vpn_forward.1} parent=1 // loop_header
      %s24 = sphi 0, %s28
      %p25 = scmp.ge.s32.totalorder %s24, 8
      %s34 = sphi 0, %s36
      %s37 = sphi 0, %s34
      %s38 = sphi 0, %s37
      %s54 = sphi 0, %s38
      %s58 = sphi 0, %s58
      %s60 = sphi 0, %s58
      %s61 = sphi 0, %s60
      %s75 = sphi 0, %s61
      %s79 = sphi 0, %s79
      %s81 = sphi 0, %s79
      %s82 = sphi 0, %s81
      %s96 = sphi 0, %s82
      %s102 = sphi 0, %s104
      %s105 = sphi 0, %s102
      %s106 = sphi 0, %s105
      %s122 = sphi 0, %s106
      %s128 = sphi 0, %s130
      %s131 = sphi 0, %s128
      %s132 = sphi 0, %s131
      %s148 = sphi 0, %s132
      %s154 = sphi 0, %s156
      %s157 = sphi 0, %s154
      %s158 = sphi 0, %s157
      %s174 = sphi 0, %s158
      %s180 = sphi 0, %s182
      %s183 = sphi 0, %s180
      %s184 = sphi 0, %s183
      %s200 = sphi 0, %s184
      %s204 = sphi 0, %s204
      %s206 = sphi 0, %s204
      %s207 = sphi 0, %s206
      %s221 = sphi 0, %s207
      %s225 = sphi 0, %s225
      %s227 = sphi 0, %s225
      %s228 = sphi 0, %s227
      %s242 = sphi 0, %s228
      %s246 = sphi 0, %s246
      %s248 = sphi 0, %s246
      %s249 = sphi 0, %s248
      %s263 = sphi 0, %s249
    $region4: #{vpn_forward.1} parent=1 // loop_header_branch
      %27 = sbr.rel (%p25) target = $region8
    $region5: #{vpn_forward.1} parent=1 // loop_body
      %s29 = ssub.s32 %s24, 1
      %s30 = ssub.s32 %s24, 2
      %s31 = sadd.s32 %s24, 1
      %s32 = ssub.s32 %s24, %s31
      %p33 = scmp.eq.s32.totalorder %s32, 0
      %s35 = sadd.s32 %s34, 1
      %s36 = scalar_select %p33, %s34, %s35
      %p39 = pneg %p33
      %p40 = scmp.eq.s32.totalorder %s24, 5
      %p41 = por %p39, %p40
      %p42 = scmp.ne.s32.totalorder %s34, %s37
      %p43 = scmp.eq.s32.totalorder %s24, 0
      %p44 = por %p42, %p43
      %p45 = scmp.ne.s32.totalorder %s34, %s37
      %p46 = scmp.eq.s32.totalorder %s29, 5
      %p47 = por %p45, %p46
      %p48 = scmp.ne.s32.totalorder %s37, %s38
      %p49 = scmp.eq.s32.totalorder %s29, 0
      %p50 = por %p48, %p49
      %p51 = scmp.ne.s32.totalorder %s37, %s38
      %p52 = scmp.eq.s32.totalorder %s30, 5
      %p53 = por %p51, %p52
      %p55 = scmp.ne.s32.totalorder %s38, %s54
      %p56 = scmp.eq.s32.totalorder %s30, 0
      %p57 = por %p55, %p56
      %s59 = sadd.s32 %s58, 1
      %p62 = scmp.eq.s32.totalorder %s24, 5
      %p63 = scmp.ne.s32.totalorder %s58, %s60
      %p64 = scmp.eq.s32.totalorder %s24, 0
      %p65 = por %p63, %p64
      %p66 = scmp.ne.s32.totalorder %s58, %s60
      %p67 = scmp.eq.s32.totalorder %s29, 5
      %p68 = por %p66, %p67
      %p69 = scmp.ne.s32.totalorder %s60, %s61
      %p70 = scmp.eq.s32.totalorder %s29, 0
      %p71 = por %p69, %p70
      %p72 = scmp.ne.s32.totalorder %s60, %s61
      %p73 = scmp.eq.s32.totalorder %s30, 5
      %p74 = por %p72, %p73
      %p76 = scmp.ne.s32.totalorder %s61, %s75
      %p77 = scmp.eq.s32.totalorder %s30, 0
      %p78 = por %p76, %p77
      %s80 = sadd.s32 %s79, 1
      %p83 = scmp.eq.s32.totalorder %s24, 5
      %p84 = scmp.ne.s32.totalorder %s79, %s81
      %p85 = scmp.eq.s32.totalorder %s24, 0
      %p86 = por %p84, %p85
      %p87 = scmp.ne.s32.totalorder %s79, %s81
      %p88 = scmp.eq.s32.totalorder %s29, 5
      %p89 = por %p87, %p88
      %p90 = scmp.ne.s32.totalorder %s81, %s82
      %p91 = scmp.eq.s32.totalorder %s29, 0
      %p92 = por %p90, %p91
      %p93 = scmp.ne.s32.totalorder %s81, %s82
      %p94 = scmp.eq.s32.totalorder %s30, 5
      %p95 = por %p93, %p94
      %p97 = scmp.ne.s32.totalorder %s82, %s96
      %p98 = scmp.eq.s32.totalorder %s30, 0
      %p99 = por %p97, %p98
      %s100 = ssub.s32 %s24, %s31
      %p101 = scmp.eq.s32.totalorder %s100, 0
      %s103 = sadd.s32 %s102, 1
      %s104 = scalar_select %p101, %s102, %s103
      %p107 = pneg %p101
      %p108 = scmp.eq.s32.totalorder %s24, 5
      %p109 = por %p107, %p108
      %p110 = scmp.ne.s32.totalorder %s102, %s105
      %p111 = scmp.eq.s32.totalorder %s24, 0
      %p112 = por %p110, %p111
      %p113 = scmp.ne.s32.totalorder %s102, %s105
      %p114 = scmp.eq.s32.totalorder %s29, 5
      %p115 = por %p113, %p114
      %p116 = scmp.ne.s32.totalorder %s105, %s106
      %p117 = scmp.eq.s32.totalorder %s29, 0
      %p118 = por %p116, %p117
      %p119 = scmp.ne.s32.totalorder %s105, %s106
      %p120 = scmp.eq.s32.totalorder %s30, 5
      %p121 = por %p119, %p120
      %p123 = scmp.ne.s32.totalorder %s106, %s122
      %p124 = scmp.eq.s32.totalorder %s30, 0
      %p125 = por %p123, %p124
      %s126 = ssub.s32 %s24, %s31
      %p127 = scmp.eq.s32.totalorder %s126, 0
      %s129 = sadd.s32 %s128, 1
      %s130 = scalar_select %p127, %s128, %s129
      %p133 = pneg %p127
      %p134 = scmp.eq.s32.totalorder %s24, 5
      %p135 = por %p133, %p134
      %p136 = scmp.ne.s32.totalorder %s128, %s131
      %p137 = scmp.eq.s32.totalorder %s24, 0
      %p138 = por %p136, %p137
      %p139 = scmp.ne.s32.totalorder %s128, %s131
      %p140 = scmp.eq.s32.totalorder %s29, 5
      %p141 = por %p139, %p140
      %p142 = scmp.ne.s32.totalorder %s131, %s132
      %p143 = scmp.eq.s32.totalorder %s29, 0
      %p144 = por %p142, %p143
      %p145 = scmp.ne.s32.totalorder %s131, %s132
      %p146 = scmp.eq.s32.totalorder %s30, 5
      %p147 = por %p145, %p146
      %p149 = scmp.ne.s32.totalorder %s132, %s148
      %p150 = scmp.eq.s32.totalorder %s30, 0
      %p151 = por %p149, %p150
      %s152 = ssub.s32 %s24, %s31
      %p153 = scmp.eq.s32.totalorder %s152, 0
      %s155 = sadd.s32 %s154, 1
      %s156 = scalar_select %p153, %s154, %s155
      %p159 = pneg %p153
      %p160 = scmp.eq.s32.totalorder %s24, 5
      %p161 = por %p159, %p160
      %p162 = scmp.ne.s32.totalorder %s154, %s157
      %p163 = scmp.eq.s32.totalorder %s24, 0
      %p164 = por %p162, %p163
      %p165 = scmp.ne.s32.totalorder %s154, %s157
      %p166 = scmp.eq.s32.totalorder %s29, 5
      %p167 = por %p165, %p166
      %p168 = scmp.ne.s32.totalorder %s157, %s158
      %p169 = scmp.eq.s32.totalorder %s29, 0
      %p170 = por %p168, %p169
      %p171 = scmp.ne.s32.totalorder %s157, %s158
      %p172 = scmp.eq.s32.totalorder %s30, 5
      %p173 = por %p171, %p172
      %p175 = scmp.ne.s32.totalorder %s158, %s174
      %p176 = scmp.eq.s32.totalorder %s30, 0
      %p177 = por %p175, %p176
      %s178 = ssub.s32 %s24, %s31
      %p179 = scmp.eq.s32.totalorder %s178, 0
      %s181 = sadd.s32 %s180, 1
      %s182 = scalar_select %p179, %s180, %s181
      %p185 = pneg %p179
      %p186 = scmp.eq.s32.totalorder %s24, 5
      %p187 = por %p185, %p186
      %p188 = scmp.ne.s32.totalorder %s180, %s183
      %p189 = scmp.eq.s32.totalorder %s24, 0
      %p190 = por %p188, %p189
      %p191 = scmp.ne.s32.totalorder %s180, %s183
      %p192 = scmp.eq.s32.totalorder %s29, 5
      %p193 = por %p191, %p192
      %p194 = scmp.ne.s32.totalorder %s183, %s184
      %p195 = scmp.eq.s32.totalorder %s29, 0
      %p196 = por %p194, %p195
      %p197 = scmp.ne.s32.totalorder %s183, %s184
      %p198 = scmp.eq.s32.totalorder %s30, 5
      %p199 = por %p197, %p198
      %p201 = scmp.ne.s32.totalorder %s184, %s200
      %p202 = scmp.eq.s32.totalorder %s30, 0
      %p203 = por %p201, %p202
      %s205 = sadd.s32 %s204, 1
      %p208 = scmp.eq.s32.totalorder %s24, 5
      %p209 = scmp.ne.s32.totalorder %s204, %s206
      %p210 = scmp.eq.s32.totalorder %s24, 0
      %p211 = por %p209, %p210
      %p212 = scmp.ne.s32.totalorder %s204, %s206
      %p213 = scmp.eq.s32.totalorder %s29, 5
      %p214 = por %p212, %p213
      %p215 = scmp.ne.s32.totalorder %s206, %s207
      %p216 = scmp.eq.s32.totalorder %s29, 0
      %p217 = por %p215, %p216
      %p218 = scmp.ne.s32.totalorder %s206, %s207
      %p219 = scmp.eq.s32.totalorder %s30, 5
      %p220 = por %p218, %p219
      %p222 = scmp.ne.s32.totalorder %s207, %s221
      %p223 = scmp.eq.s32.totalorder %s30, 0
      %p224 = por %p222, %p223
      %s226 = sadd.s32 %s225, 1
      %p229 = scmp.eq.s32.totalorder %s24, 5
      %p230 = scmp.ne.s32.totalorder %s225, %s227
      %p231 = scmp.eq.s32.totalorder %s24, 0
      %p232 = por %p230, %p231
      %p233 = scmp.ne.s32.totalorder %s225, %s227
      %p234 = scmp.eq.s32.totalorder %s29, 5
      %p235 = por %p233, %p234
      %p236 = scmp.ne.s32.totalorder %s227, %s228
      %p237 = scmp.eq.s32.totalorder %s29, 0
      %p238 = por %p236, %p237
      %p239 = scmp.ne.s32.totalorder %s227, %s228
      %p240 = scmp.eq.s32.totalorder %s30, 5
      %p241 = por %p239, %p240
      %p243 = scmp.ne.s32.totalorder %s228, %s242
      %p244 = scmp.eq.s32.totalorder %s30, 0
      %p245 = por %p243, %p244
      %s247 = sadd.s32 %s246, 1
      %p250 = scmp.eq.s32.totalorder %s24, 5
      %p251 = scmp.ne.s32.totalorder %s246, %s248
      %p252 = scmp.eq.s32.totalorder %s24, 0
      %p253 = por %p251, %p252
      %p254 = scmp.ne.s32.totalorder %s246, %s248
      %p255 = scmp.eq.s32.totalorder %s29, 5
      %p256 = por %p254, %p255
      %p257 = scmp.ne.s32.totalorder %s248, %s249
      %p258 = scmp.eq.s32.totalorder %s29, 0
      %p259 = por %p257, %p258
      %p260 = scmp.ne.s32.totalorder %s248, %s249
      %p261 = scmp.eq.s32.totalorder %s30, 5
      %p262 = por %p260, %p261
      %p264 = scmp.ne.s32.totalorder %s249, %s263
      %p265 = scmp.eq.s32.totalorder %s30, 0
      %p266 = por %p264, %p265
      %p267 = scmp.le.s32.totalorder 1, %s24
      %p268 = scmp.lt.s32.totalorder %s24, 7
      %p269 = pnand %p267, %p268
      %p270 = pneg %p269
      // Predicated region
      $region9: #{vpn_forward.1} parent=5 // pred_check
        _
      $region10: #{vpn_forward.1} parent=5 // pred_check_branch
        %272 = sbr.rel (%p269) target = $region12
      $region11: #{vpn_forward.1} parent=5 // pred_region
        %s273 = ssub.s32 %s24, 1
        // Predicated region
        $region13: #{vpn_forward.1} parent=11 // pred_check
          %p274 = pneg %p71
        $region14: #{vpn_forward.1} parent=11 // pred_check_branch
          %276 = sbr.rel (%p274) target = $region16
        $region15: #{vpn_forward.1} parent=11 // pred_region
          _
        $region16: #{vpn_forward.1} parent=11 // pred_fallthru
          _
        // Predicated region
        $region17: #{vpn_forward.1} parent=11 // pred_check
          %p277 = pneg %p92
        $region18: #{vpn_forward.1} parent=11 // pred_check_branch
          %279 = sbr.rel (%p277) target = $region20
        $region19: #{vpn_forward.1} parent=11 // pred_region
          _
        $region20: #{vpn_forward.1} parent=11 // pred_fallthru
          _
        // Predicated region
        $region21: #{vpn_forward.1} parent=11 // pred_check
          %p280 = pneg %p217
        $region22: #{vpn_forward.1} parent=11 // pred_check_branch
          %282 = sbr.rel (%p280) target = $region24
        $region23: #{vpn_forward.1} parent=11 // pred_region
          %s284 = ssub.s32 64, 64
          %285 = vsyncadd [#allocation10], %s284
          %s287 = sshll.u32 [#allocation11], 4
          %s288 = int_to_ptr.vmem [resolvable:$true] %s287
          %290 = dma.hbm_to_vmem [thread:$0]  %s7, 64, %s288, [#allocation10]
        $region24: #{vpn_forward.1} parent=11 // pred_fallthru
          _
        // Predicated region
        $region25: #{vpn_forward.1} parent=11 // pred_check
          %p291 = pneg %p238
        $region26: #{vpn_forward.1} parent=11 // pred_check_branch
          %293 = sbr.rel (%p291) target = $region28
        $region27: #{vpn_forward.1} parent=11 // pred_region
          _
        $region28: #{vpn_forward.1} parent=11 // pred_fallthru
          _
      $region12: #{vpn_forward.1} parent=5 // pred_fallthru
        _
      %p294 = scmp.lt.s32.totalorder %s24, 6
      // Predicated region
      $region29: #{vpn_forward.1} parent=5 // pred_check
        %p295 = pneg %p294
      $region30: #{vpn_forward.1} parent=5 // pred_check_branch
        %297 = sbr.rel (%p295) target = $region32
      $region31: #{vpn_forward.1} parent=5 // pred_region
        // Predicated region
        $region33: #{vpn_forward.1} parent=31 // pred_check
          %p298 = pneg %p44
        $region34: #{vpn_forward.1} parent=31 // pred_check_branch
          %300 = sbr.rel (%p298) target = $region36
        $region35: #{vpn_forward.1} parent=31 // pred_region
          %s301 = sand.u32 %s34, 1
          %s302 = sand.u32 %s34, 1
          %s303 = smul.addr %s302, 16
          %s304 = scalar_lea.vmem [#allocation3], %s303
          %s305 = smul.addr %s24, 2
          %s306 = smul.addr %s305, 4
          %s307 = scalar_lea.vmem %s0, %s306
          // Predicated region
          $region37: #{vpn_forward.1} parent=35 // pred_check
            _
          $region38: #{vpn_forward.1} parent=35 // pred_check_branch
            %309 = sbr.rel (0) target = $region40
          $region39: #{vpn_forward.1} parent=35 // pred_region
            // Predicated region
            $region41: #{vpn_forward.1} parent=39 // pred_check
              _
            $region42: #{vpn_forward.1} parent=39 // pred_check_branch
              %311 = sbr.rel (0) target = $region44
            $region43: #{vpn_forward.1} parent=39 // pred_region
              // Predicated region
              $region56: #{vpn_forward.1} parent=43 // pred_check
                _
              $region57: #{vpn_forward.1} parent=43 // pred_check_branch
                %328 = sbr.rel (0) target = $region59
              $region58: #{vpn_forward.1} parent=43 // pred_region
                loop: start=0, step=1, limit=1
                $region60: #{vpn_forward.1} parent=58 // loop_pre_header
                  _
                $region61: #{vpn_forward.1} parent=58 // loop_header
                  %s330 = sphi 0, %s334
                  %p331 = scmp.ge.s32.totalorder %s330, 1
                  %s335 = sphi %s307, %s307
                  %s336 = sphi %s304, %s304
                $region62: #{vpn_forward.1} parent=58 // loop_header_branch
                  %333 = sbr.rel (%p331) target = $region66
                $region63: #{vpn_forward.1} parent=58 // loop_body
                  %v337 = vld [vmem:[%s335] sm:$0xff]
                  %338 = vst [vmem:[%s336] sm:$0xff] %v337
                  %v339 = vld [vmem:[%s335 + $0x30] sm:$0xff]
                  %340 = vst [vmem:[%s336 + $0x8] sm:$0xff] %v339
                $region64: #{vpn_forward.1} parent=58 // loop_footer
                  %s334 = sadd.s32 1, %s330
                $region65: #{vpn_forward.1} parent=58 // loop_footer_branch
                  %329 = sbr.rel target = $region61
                $region66: #{vpn_forward.1} parent=58 // loop_exit
                  _
              $region59: #{vpn_forward.1} parent=43 // pred_fallthru
                _
              // Predicated region
              $region67: #{vpn_forward.1} parent=43 // pred_check
                _
              $region68: #{vpn_forward.1} parent=43 // pred_check_branch
                %342 = sbr.rel target = $region70
              $region69: #{vpn_forward.1} parent=43 // pred_region
                _
              $region70: #{vpn_forward.1} parent=43 // pred_fallthru
                _
            $region44: #{vpn_forward.1} parent=39 // pred_fallthru
              _
            // Predicated region
            $region45: #{vpn_forward.1} parent=39 // pred_check
              _
            $region46: #{vpn_forward.1} parent=39 // pred_check_branch
              %313 = sbr.rel target = $region48
            $region47: #{vpn_forward.1} parent=39 // pred_region
              loop: start=0, step=1, limit=1
              $region49: #{vpn_forward.1} parent=47 // loop_pre_header
                _
              $region50: #{vpn_forward.1} parent=47 // loop_header
                %s316 = sphi 0, %s320
                %p317 = scmp.ge.s32.totalorder %s316, 1
                %s321 = sphi %s307, %s307
                %s322 = sphi %s304, %s304
              $region51: #{vpn_forward.1} parent=47 // loop_header_branch
                %319 = sbr.rel (%p317) target = $region55
              $region52: #{vpn_forward.1} parent=47 // loop_body
                %v323 = vld [vmem:[%s321] sm:$0xff]
                %324 = vst [vmem:[%s322] sm:$0xff] %v323
                %v325 = vld [vmem:[%s321 + $0x30] sm:$0xff]
                %326 = vst [vmem:[%s322 + $0x8] sm:$0xff] %v325
              $region53: #{vpn_forward.1} parent=47 // loop_footer
                %s320 = sadd.s32 1, %s316
              $region54: #{vpn_forward.1} parent=47 // loop_footer_branch
                %315 = sbr.rel target = $region50
              $region55: #{vpn_forward.1} parent=47 // loop_exit
                _
            $region48: #{vpn_forward.1} parent=39 // pred_fallthru
              _
          $region40: #{vpn_forward.1} parent=35 // pred_fallthru
            _
          %343 = vnop
        $region36: #{vpn_forward.1} parent=31 // pred_fallthru
          _
        // Predicated region
        $region71: #{vpn_forward.1} parent=31 // pred_check
          %p344 = pneg %p112
        $region72: #{vpn_forward.1} parent=31 // pred_check_branch
          %346 = sbr.rel (%p344) target = $region74
        $region73: #{vpn_forward.1} parent=31 // pred_region
          %s347 = sand.u32 %s102, 1
          %s348 = scalar_lea.sflag [#allocation5], %s347
          %s349 = sand.u32 %s102, 1
          %s350 = smul.addr %s349, 1024
          %s351 = scalar_lea.vmem [#allocation4], %s350
          %s353 = ssub.s32 16384, 16384
          %354 = vsyncadd %s348, %s353
          %s355 = smul.addr %s24, 256
          %s356 = smul.addr %s355, 64
          %s357 = scalar_lea.hbm %s3, %s356
          %s358 = sshll.u32 %s351, 4
          %s359 = int_to_ptr.vmem [resolvable:$true] %s358
          %364 = dma.hbm_to_vmem [thread:$0]  %s357, 16384, %s359, %s348, 512, 512, 32
        $region74: #{vpn_forward.1} parent=31 // pred_fallthru
          _
        // Predicated region
        $region75: #{vpn_forward.1} parent=31 // pred_check
          %p365 = pneg %p138
        $region76: #{vpn_forward.1} parent=31 // pred_check_branch
          %367 = sbr.rel (%p365) target = $region78
        $region77: #{vpn_forward.1} parent=31 // pred_region
          %s368 = sand.u32 %s24, 1
          %s369 = scalar_lea.sflag [#allocation7], %s368
          %s370 = sand.u32 %s128, 1
          %s371 = smul.addr %s370, 8
          %s372 = scalar_lea.vmem [#allocation6], %s371
          %s374 = ssub.s32 128, 128
          %375 = vsyncadd %s369, %s374
          %s376 = smul.addr %s24, 8
          %s377 = smul.addr %s376, 16
          %s378 = scalar_lea.hbm %s4, %s377
          %s380 = sshll.u32 %s372, 4
          %s381 = int_to_ptr.vmem [resolvable:$true] %s380
          %383 = dma.hbm_to_vmem [thread:$0]  %s378, 128, %s381, %s369
        $region78: #{vpn_forward.1} parent=31 // pred_fallthru
          _
        // Predicated region
        $region79: #{vpn_forward.1} parent=31 // pred_check
          %p384 = pneg %p164
        $region80: #{vpn_forward.1} parent=31 // pred_check_branch
          %386 = sbr.rel (%p384) target = $region82
        $region81: #{vpn_forward.1} parent=31 // pred_region
          %s387 = sand.u32 %s24, 1
          %s388 = scalar_lea.sflag [#allocation7], %s387
          %s389 = sand.u32 %s154, 1
          %s390 = smul.addr %s389, 1024
          %s391 = scalar_lea.vmem [#allocation8], %s390
          %s393 = ssub.s32 16384, 16384
          %394 = vsyncadd %s388, %s393
          %s395 = smul.addr %s24, 256
          %s396 = smul.addr %s395, 64
          %s397 = scalar_lea.hbm %s5, %s396
          %s398 = sshll.u32 %s391, 4
          %s399 = int_to_ptr.vmem [resolvable:$true] %s398
          %404 = dma.hbm_to_vmem [thread:$0]  %s397, 16384, %s399, %s388, 128, 128, 8
        $region82: #{vpn_forward.1} parent=31 // pred_fallthru
          _
        // Predicated region
        $region83: #{vpn_forward.1} parent=31 // pred_check
          %p405 = pneg %p190
        $region84: #{vpn_forward.1} parent=31 // pred_check_branch
          %407 = sbr.rel (%p405) target = $region86
        $region85: #{vpn_forward.1} parent=31 // pred_region
          %s408 = sand.u32 %s24, 1
          %s409 = scalar_lea.sflag [#allocation10], %s408
          %s410 = sand.u32 %s180, 1
          %s411 = smul.addr %s410, 2
          %s412 = scalar_lea.vmem [#allocation9], %s411
          %s414 = ssub.s32 32, 32
          %415 = vsyncadd %s409, %s414
          %s416 = smul.addr %s24, 2
          %s417 = smul.addr %s416, 16
          %s418 = scalar_lea.hbm %s6, %s417
          %s420 = sshll.u32 %s412, 4
          %s421 = int_to_ptr.vmem [resolvable:$true] %s420
          %423 = dma.hbm_to_vmem [thread:$0]  %s418, 32, %s421, %s409
        $region86: #{vpn_forward.1} parent=31 // pred_fallthru
          _
      $region32: #{vpn_forward.1} parent=5 // pred_fallthru
        _
      %p424 = scmp.le.s32.totalorder 1, %s24
      %p425 = scmp.lt.s32.totalorder %s24, 7
      %p426 = pnand %p424, %p425
      %p427 = pneg %p426
      // Predicated region
      $region87: #{vpn_forward.1} parent=5 // pred_check
        _
      $region88: #{vpn_forward.1} parent=5 // pred_check_branch
        %429 = sbr.rel (%p426) target = $region90
      $region89: #{vpn_forward.1} parent=5 // pred_region
        %s430 = ssub.s32 %s24, 1
        %s431 = sand.u32 %s37, 1
        %s432 = sand.u32 %s37, 1
        %s433 = smul.addr %s432, 16
        %s434 = scalar_lea.vmem [#allocation3], %s433
        // Predicated region
        $region91: #{vpn_forward.1} parent=89 // pred_check
          %p435 = pneg %p50
        $region92: #{vpn_forward.1} parent=89 // pred_check_branch
          %437 = sbr.rel (%p435) target = $region94
        $region93: #{vpn_forward.1} parent=89 // pred_region
          _
        $region94: #{vpn_forward.1} parent=89 // pred_fallthru
          _
        %s438 = sand.u32 %s105, 1
        %s439 = scalar_lea.sflag [#allocation5], %s438
        %s440 = sand.u32 %s105, 1
        %s441 = smul.addr %s440, 1024
        %s442 = scalar_lea.vmem [#allocation4], %s441
        // Predicated region
        $region95: #{vpn_forward.1} parent=89 // pred_check
          %p443 = pneg %p118
        $region96: #{vpn_forward.1} parent=89 // pred_check_branch
          %445 = sbr.rel (%p443) target = $region98
        $region97: #{vpn_forward.1} parent=89 // pred_region
          %446 = dma.done %s439, 16384
        $region98: #{vpn_forward.1} parent=89 // pred_fallthru
          _
        %s447 = sand.u32 %s29, 1
        %s448 = scalar_lea.sflag [#allocation7], %s447
        %s449 = sand.u32 %s131, 1
        %s450 = smul.addr %s449, 8
        %s451 = scalar_lea.vmem [#allocation6], %s450
        // Predicated region
        $region99: #{vpn_forward.1} parent=89 // pred_check
          %p452 = pneg %p144
        $region100: #{vpn_forward.1} parent=89 // pred_check_branch
          %454 = sbr.rel (%p452) target = $region102
        $region101: #{vpn_forward.1} parent=89 // pred_region
          %455 = dma.done %s448, 128
        $region102: #{vpn_forward.1} parent=89 // pred_fallthru
          _
        %s456 = sand.u32 %s29, 1
        %s457 = scalar_lea.sflag [#allocation7], %s456
        %s458 = sand.u32 %s157, 1
        %s459 = smul.addr %s458, 1024
        %s460 = scalar_lea.vmem [#allocation8], %s459
        // Predicated region
        $region103: #{vpn_forward.1} parent=89 // pred_check
          %p461 = pneg %p170
        $region104: #{vpn_forward.1} parent=89 // pred_check_branch
          %463 = sbr.rel (%p461) target = $region106
        $region105: #{vpn_forward.1} parent=89 // pred_region
          %464 = dma.done %s457, 16384
        $region106: #{vpn_forward.1} parent=89 // pred_fallthru
          _
        %s465 = sand.u32 %s29, 1
        %s466 = scalar_lea.sflag [#allocation10], %s465
        %s467 = sand.u32 %s183, 1
        %s468 = smul.addr %s467, 2
        %s469 = scalar_lea.vmem [#allocation9], %s468
        // Predicated region
        $region107: #{vpn_forward.1} parent=89 // pred_check
          %p470 = pneg %p196
        $region108: #{vpn_forward.1} parent=89 // pred_check_branch
          %472 = sbr.rel (%p470) target = $region110
        $region109: #{vpn_forward.1} parent=89 // pred_region
          %473 = dma.done %s466, 32
        $region110: #{vpn_forward.1} parent=89 // pred_fallthru
          _
        // Predicated region
        $region111: #{vpn_forward.1} parent=89 // pred_check
          %p474 = pneg %p217
        $region112: #{vpn_forward.1} parent=89 // pred_check_branch
          %476 = sbr.rel (%p474) target = $region114
        $region113: #{vpn_forward.1} parent=89 // pred_region
          %477 = dma.done [#allocation10], 64
        $region114: #{vpn_forward.1} parent=89 // pred_fallthru
          _
        %s478 = sand.u32 %s37, 1
        %s479 = sand.u32 %s37, 1
        %s480 = smul.addr %s479, 16
        %s481 = scalar_lea.vmem [#allocation3], %s480
        %p482 = pneg %p50
        %p483 = pneg %p47
        %p484 = pneg %p71
        %p485 = pneg %p68
        %p486 = pneg %p92
        %p487 = pneg %p89
        %s488 = sand.u32 %s105, 1
        %s489 = scalar_lea.sflag [#allocation5], %s488
        %s490 = sand.u32 %s105, 1
        %s491 = smul.addr %s490, 1024
        %s492 = scalar_lea.vmem [#allocation4], %s491
        %p493 = pneg %p118
        %p494 = pneg %p115
        %s495 = sand.u32 %s29, 1
        %s496 = scalar_lea.sflag [#allocation7], %s495
        %s497 = sand.u32 %s131, 1
        %s498 = smul.addr %s497, 8
        %s499 = scalar_lea.vmem [#allocation6], %s498
        %p500 = pneg %p144
        %p501 = pneg %p141
        %s502 = sand.u32 %s29, 1
        %s503 = scalar_lea.sflag [#allocation7], %s502
        %s504 = sand.u32 %s157, 1
        %s505 = smul.addr %s504, 1024
        %s506 = scalar_lea.vmem [#allocation8], %s505
        %p507 = pneg %p170
        %p508 = pneg %p167
        %s509 = sand.u32 %s29, 1
        %s510 = scalar_lea.sflag [#allocation10], %s509
        %s511 = sand.u32 %s183, 1
        %s512 = smul.addr %s511, 2
        %s513 = scalar_lea.vmem [#allocation9], %s512
        %p514 = pneg %p196
        %p515 = pneg %p193
        %p516 = pneg %p217
        %p517 = pneg %p214
        %p518 = pneg %p238
        %p519 = pneg %p235
        %p520 = pneg %p259
        %p521 = pneg %p256
        %p522 = scmp.eq.s32.totalorder %s29, 0
        // Predicated region
        $region115: #{vpn_forward.1} parent=89 // pred_check
          %p523 = pneg %p522
        $region116: #{vpn_forward.1} parent=89 // pred_check_branch
          %525 = sbr.rel (%p523) target = $region118
        $region117: #{vpn_forward.1} parent=89 // pred_region
          %526 = vst [vmem:[#allocation2] sm:$0xff] 0.0
          %527 = vst [vmem:[#allocation2 + $0x8] sm:$0xff] 0.0
          %528 = vst [vmem:[#allocation2 + $0x10] sm:$0xff] 0.0
          %529 = vst [vmem:[#allocation2 + $0x18] sm:$0xff] 0.0
        $region118: #{vpn_forward.1} parent=89 // pred_fallthru
          _
        %v530 = vld [vmem:[%s1] sm:$0xff]
        %v531 = vld [vmem:[%s2] sm:$0xff]
        %v532 = vld [vmem:[%s434] sm:$0xff]
        %534 = vset.pattern.permute.xlu0 0
        %535 = vperm.xlu0 %534, %v531
        %v536 = vpop.permute.xlu0 %535
        %v539 = vcombine.high %v532, %v532
        %vm540 = vcmask 31744
        %v542 = vsel %vm540, %v530, 0
        %vm544 = vcmask 1043456
        %v545 = vsel %vm544, %v532, 0
        %v547 = vsel %vm544, %v539, 0
        %549 = vmatprep.subr.mxu0 %v547
        %550 = vmatpush1.msra.mxu0 %v545
        %551 = vmatprep.subr.mxu0 0.0
        %552 = vmatpush1.msra.mxu0 0.0
        %553 = vmatprep.subr.mxu0 0.0
        %554 = vmatpush1.msra.mxu0 0.0
        %555 = vmatprep.subr.mxu0 0.0
        %556 = vmatpush1.msra.mxu0 0.0
        %557 = vmatprep.subr.mxu0 0.0
        %558 = vmatpush1.msra.mxu0 0.0
        %559 = vmatprep.subr.mxu0 0.0
        %560 = vmatpush1.msra.mxu0 0.0
        %561 = vmatprep.subr.mxu0 0.0
        %562 = vmatpush1.msra.mxu0 0.0
        %563 = vmatprep.subr.mxu0 0.0
        %564 = vmatpush1.msra.mxu0 0.0
        %565 = vmatprep.subr.mxu0 0.0
        %566 = vmatpush1.msra.mxu0 0.0
        %567 = vmatprep.subr.mxu0 0.0
        %568 = vmatpush1.msra.mxu0 0.0
        %569 = vmatprep.subr.mxu0 0.0
        %570 = vmatpush1.msra.mxu0 0.0
        %571 = vmatprep.subr.mxu0 0.0
        %572 = vmatpush1.msra.mxu0 0.0
        %573 = vmatprep.subr.mxu0 0.0
        %574 = vmatpush1.msra.mxu0 0.0
        %575 = vmatprep.subr.mxu0 0.0
        %576 = vmatpush1.msra.mxu0 0.0
        %577 = vmatprep.subr.mxu0 0.0
        %578 = vmatpush1.msra.mxu0 0.0
        %579 = vmatprep.subr.mxu0 0.0
        %580 = vmatpush1.msra.mxu0 0.0
        %581 = vmatprep.subr.mxu0 0.0
        %582 = vmatpush1.msra.mxu0 0.0
        %583 = vmatprep.subr.mxu0 0.0
        %584 = vmatpush1.msra.mxu0 0.0
        %585 = vmatprep.subr.mxu0 0.0
        %586 = vmatpush1.msra.mxu0 0.0
        %587 = vmatprep.subr.mxu0 0.0
        %588 = vmatpush1.msra.mxu0 0.0
        %589 = vmatprep.subr.mxu0 0.0
        %590 = vmatpush1.msra.mxu0 0.0
        %591 = vmatprep.subr.mxu0 0.0
        %592 = vmatpush1.msra.mxu0 0.0
        %593 = vmatprep.subr.mxu0 0.0
        %594 = vmatpush1.msra.mxu0 0.0
        %595 = vmatprep.subr.mxu0 0.0
        %596 = vmatpush1.msra.mxu0 0.0
        %597 = vmatprep.subr.mxu0 0.0
        %598 = vmatpush1.msra.mxu0 0.0
        %599 = vmatprep.subr.mxu0 0.0
        %600 = vmatpush1.msra.mxu0 0.0
        %601 = vmatprep.subr.mxu0 0.0
        %602 = vmatpush1.msra.mxu0 0.0
        %603 = vmatprep.subr.mxu0 0.0
        %604 = vmatpush1.msra.mxu0 0.0
        %605 = vmatprep.subr.mxu0 0.0
        %606 = vmatpush1.msra.mxu0 0.0
        %607 = vmatprep.subr.mxu0 0.0
        %608 = vmatpush1.msra.mxu0 0.0
        %609 = vmatprep.subr.mxu0 0.0
        %610 = vmatpush1.msra.mxu0 0.0
        %611 = vmatprep.subr.mxu0 0.0
        %612 = vmatpush1.msra.mxu0 0.0
        %613 = vmatprep.mubr.f32.mxu0 0.0
        %614 = vmatmul.mubr.f32.gmra.mrb[0].mxu0 %v542
        %v615 = vpop.f32.mrb[0].mxu0
        %v616 = vadd.f32 %v536, %v615
        %v617 = vpop.f32.mrb[0].mxu0
        %v618 = vadd.f32 %v536, %v617
        %619 = vdwg.mxu0
        %v620 = vmax.f32 %v616, 0.0
        %v621 = vmax.f32 %v618, 0.0
        %s622 = scalar_lea.vmem %s434, 8 [#allocation3]
        %v623 = vld [vmem:[%s622] sm:$0xff]
        %v625 = vcombine.high %v623, %v623
        %v626 = vsel %vm544, %v623, 0
        %v628 = vsel %vm544, %v625, 0
        %630 = vmatprep.subr.mxu0 %v628
        %631 = vmatpush1.msra.mxu0 %v626
        %632 = vmatprep.subr.mxu0 0.0
        %633 = vmatpush1.msra.mxu0 0.0
        %634 = vmatprep.subr.mxu0 0.0
        %635 = vmatpush1.msra.mxu0 0.0
        %636 = vmatprep.subr.mxu0 0.0
        %637 = vmatpush1.msra.mxu0 0.0
        %638 = vmatprep.subr.mxu0 0.0
        %639 = vmatpush1.msra.mxu0 0.0
        %640 = vmatprep.subr.mxu0 0.0
        %641 = vmatpush1.msra.mxu0 0.0
        %642 = vmatprep.subr.mxu0 0.0
        %643 = vmatpush1.msra.mxu0 0.0
        %644 = vmatprep.subr.mxu0 0.0
        %645 = vmatpush1.msra.mxu0 0.0
        %646 = vmatprep.subr.mxu0 0.0
        %647 = vmatpush1.msra.mxu0 0.0
        %648 = vmatprep.subr.mxu0 0.0
        %649 = vmatpush1.msra.mxu0 0.0
        %650 = vmatprep.subr.mxu0 0.0
        %651 = vmatpush1.msra.mxu0 0.0
        %652 = vmatprep.subr.mxu0 0.0
        %653 = vmatpush1.msra.mxu0 0.0
        %654 = vmatprep.subr.mxu0 0.0
        %655 = vmatpush1.msra.mxu0 0.0
        %656 = vmatprep.subr.mxu0 0.0
        %657 = vmatpush1.msra.mxu0 0.0
        %658 = vmatprep.subr.mxu0 0.0
        %659 = vmatpush1.msra.mxu0 0.0
        %660 = vmatprep.subr.mxu0 0.0
        %661 = vmatpush1.msra.mxu0 0.0
        %662 = vmatprep.subr.mxu0 0.0
        %663 = vmatpush1.msra.mxu0 0.0
        %664 = vmatprep.subr.mxu0 0.0
        %665 = vmatpush1.msra.mxu0 0.0
        %666 = vmatprep.subr.mxu0 0.0
        %667 = vmatpush1.msra.mxu0 0.0
        %668 = vmatprep.subr.mxu0 0.0
        %669 = vmatpush1.msra.mxu0 0.0
        %670 = vmatprep.subr.mxu0 0.0
        %671 = vmatpush1.msra.mxu0 0.0
        %672 = vmatprep.subr.mxu0 0.0
        %673 = vmatpush1.msra.mxu0 0.0
        %674 = vmatprep.subr.mxu0 0.0
        %675 = vmatpush1.msra.mxu0 0.0
        %676 = vmatprep.subr.mxu0 0.0
        %677 = vmatpush1.msra.mxu0 0.0
        %678 = vmatprep.subr.mxu0 0.0
        %679 = vmatpush1.msra.mxu0 0.0
        %680 = vmatprep.subr.mxu0 0.0
        %681 = vmatpush1.msra.mxu0 0.0
        %682 = vmatprep.subr.mxu0 0.0
        %683 = vmatpush1.msra.mxu0 0.0
        %684 = vmatprep.subr.mxu0 0.0
        %685 = vmatpush1.msra.mxu0 0.0
        %686 = vmatprep.subr.mxu0 0.0
        %687 = vmatpush1.msra.mxu0 0.0
        %688 = vmatprep.subr.mxu0 0.0
        %689 = vmatpush1.msra.mxu0 0.0
        %690 = vmatprep.subr.mxu0 0.0
        %691 = vmatpush1.msra.mxu0 0.0
        %692 = vmatprep.subr.mxu0 0.0
        %693 = vmatpush1.msra.mxu0 0.0
        %694 = vmatprep.mubr.f32.mxu0 0.0
        %695 = vmatmul.mubr.f32.gmra.mrb[0].mxu0 %v542
        %v696 = vpop.f32.mrb[0].mxu0
        %v697 = vadd.f32 %v536, %v696
        %v698 = vpop.f32.mrb[0].mxu0
        %v699 = vadd.f32 %v536, %v698
        %700 = vdwg.mxu0
        %v701 = vmax.f32 %v697, 0.0
        %v702 = vmax.f32 %v699, 0.0
        %v703 = vld [vmem:[%s442] sm:$0xff]
        %v704 = vld [vmem:[%s442 + $0x8] sm:$0xff]
        %v705 = vld [vmem:[%s442 + $0x10] sm:$0xff]
        %v706 = vld [vmem:[%s442 + $0x18] sm:$0xff]
        %v707 = vld [vmem:[%s442 + $0x20] sm:$0xff]
        %v708 = vld [vmem:[%s442 + $0x28] sm:$0xff]
        %v709 = vld [vmem:[%s442 + $0x30] sm:$0xff]
        %v710 = vld [vmem:[%s442 + $0x38] sm:$0xff]
        %v711 = vld [vmem:[%s442 + $0x40] sm:$0xff]
        %v712 = vld [vmem:[%s442 + $0x48] sm:$0xff]
        %v713 = vld [vmem:[%s442 + $0x50] sm:$0xff]
        %v714 = vld [vmem:[%s442 + $0x58] sm:$0xff]
        %v715 = vld [vmem:[%s442 + $0x60] sm:$0xff]
        %v716 = vld [vmem:[%s442 + $0x68] sm:$0xff]
        %v717 = vld [vmem:[%s442 + $0x70] sm:$0xff]
        %v718 = vld [vmem:[%s442 + $0x78] sm:$0xff]
        %v719 = vld [vmem:[%s442 + $0x80] sm:$0xff]
        %v720 = vld [vmem:[%s442 + $0x88] sm:$0xff]
        %v721 = vld [vmem:[%s442 + $0x90] sm:$0xff]
        %v722 = vld [vmem:[%s442 + $0x98] sm:$0xff]
        %v723 = vld [vmem:[%s442 + $0xa0] sm:$0xff]
        %v724 = vld [vmem:[%s442 + $0xa8] sm:$0xff]
        %v725 = vld [vmem:[%s442 + $0xb0] sm:$0xff]
        %v726 = vld [vmem:[%s442 + $0xb8] sm:$0xff]
        %v727 = vld [vmem:[%s442 + $0xc0] sm:$0xff]
        %v728 = vld [vmem:[%s442 + $0xc8] sm:$0xff]
        %v729 = vld [vmem:[%s442 + $0xd0] sm:$0xff]
        %v730 = vld [vmem:[%s442 + $0xd8] sm:$0xff]
        %v731 = vld [vmem:[%s442 + $0xe0] sm:$0xff]
        %v732 = vld [vmem:[%s442 + $0xe8] sm:$0xff]
        %v733 = vld [vmem:[%s442 + $0xf0] sm:$0xff]
        %v734 = vld [vmem:[%s442 + $0xf8] sm:$0xff]
        %v735 = vld [vmem:[%s442 + $0x100] sm:$0xff]
        %v736 = vld [vmem:[%s442 + $0x108] sm:$0xff]
        %v737 = vld [vmem:[%s442 + $0x110] sm:$0xff]
        %v738 = vld [vmem:[%s442 + $0x118] sm:$0xff]
        %v739 = vld [vmem:[%s442 + $0x120] sm:$0xff]
        %v740 = vld [vmem:[%s442 + $0x128] sm:$0xff]
        %v741 = vld [vmem:[%s442 + $0x130] sm:$0xff]
        %v742 = vld [vmem:[%s442 + $0x138] sm:$0xff]
        %v743 = vld [vmem:[%s442 + $0x140] sm:$0xff]
        %v744 = vld [vmem:[%s442 + $0x148] sm:$0xff]
        %v745 = vld [vmem:[%s442 + $0x150] sm:$0xff]
        %v746 = vld [vmem:[%s442 + $0x158] sm:$0xff]
        %v747 = vld [vmem:[%s442 + $0x160] sm:$0xff]
        %v748 = vld [vmem:[%s442 + $0x168] sm:$0xff]
        %v749 = vld [vmem:[%s442 + $0x170] sm:$0xff]
        %v750 = vld [vmem:[%s442 + $0x178] sm:$0xff]
        %v751 = vld [vmem:[%s442 + $0x180] sm:$0xff]
        %v752 = vld [vmem:[%s442 + $0x188] sm:$0xff]
        %v753 = vld [vmem:[%s442 + $0x190] sm:$0xff]
        %v754 = vld [vmem:[%s442 + $0x198] sm:$0xff]
        %v755 = vld [vmem:[%s442 + $0x1a0] sm:$0xff]
        %v756 = vld [vmem:[%s442 + $0x1a8] sm:$0xff]
        %v757 = vld [vmem:[%s442 + $0x1b0] sm:$0xff]
        %v758 = vld [vmem:[%s442 + $0x1b8] sm:$0xff]
        %v759 = vld [vmem:[%s442 + $0x1c0] sm:$0xff]
        %v760 = vld [vmem:[%s442 + $0x1c8] sm:$0xff]
        %v761 = vld [vmem:[%s442 + $0x1d0] sm:$0xff]
        %v762 = vld [vmem:[%s442 + $0x1d8] sm:$0xff]
        %v763 = vld [vmem:[%s442 + $0x1e0] sm:$0xff]
        %v764 = vld [vmem:[%s442 + $0x1e8] sm:$0xff]
        %v765 = vld [vmem:[%s442 + $0x1f0] sm:$0xff]
        %v766 = vld [vmem:[%s442 + $0x1f8] sm:$0xff]
        %v767 = vld [vmem:[%s442 + $0x200] sm:$0xff]
        %v768 = vld [vmem:[%s442 + $0x208] sm:$0xff]
        %v769 = vld [vmem:[%s442 + $0x210] sm:$0xff]
        %v770 = vld [vmem:[%s442 + $0x218] sm:$0xff]
        %v771 = vld [vmem:[%s442 + $0x220] sm:$0xff]
        %v772 = vld [vmem:[%s442 + $0x228] sm:$0xff]
        %v773 = vld [vmem:[%s442 + $0x230] sm:$0xff]
        %v774 = vld [vmem:[%s442 + $0x238] sm:$0xff]
        %v775 = vld [vmem:[%s442 + $0x240] sm:$0xff]
        %v776 = vld [vmem:[%s442 + $0x248] sm:$0xff]
        %v777 = vld [vmem:[%s442 + $0x250] sm:$0xff]
        %v778 = vld [vmem:[%s442 + $0x258] sm:$0xff]
        %v779 = vld [vmem:[%s442 + $0x260] sm:$0xff]
        %v780 = vld [vmem:[%s442 + $0x268] sm:$0xff]
        %v781 = vld [vmem:[%s442 + $0x270] sm:$0xff]
        %v782 = vld [vmem:[%s442 + $0x278] sm:$0xff]
        %v783 = vld [vmem:[%s442 + $0x280] sm:$0xff]
        %v784 = vld [vmem:[%s442 + $0x288] sm:$0xff]
        %v785 = vld [vmem:[%s442 + $0x290] sm:$0xff]
        %v786 = vld [vmem:[%s442 + $0x298] sm:$0xff]
        %v787 = vld [vmem:[%s442 + $0x2a0] sm:$0xff]
        %v788 = vld [vmem:[%s442 + $0x2a8] sm:$0xff]
        %v789 = vld [vmem:[%s442 + $0x2b0] sm:$0xff]
        %v790 = vld [vmem:[%s442 + $0x2b8] sm:$0xff]
        %v791 = vld [vmem:[%s442 + $0x2c0] sm:$0xff]
        %v792 = vld [vmem:[%s442 + $0x2c8] sm:$0xff]
        %v793 = vld [vmem:[%s442 + $0x2d0] sm:$0xff]
        %v794 = vld [vmem:[%s442 + $0x2d8] sm:$0xff]
        %v795 = vld [vmem:[%s442 + $0x2e0] sm:$0xff]
        %v796 = vld [vmem:[%s442 + $0x2e8] sm:$0xff]
        %v797 = vld [vmem:[%s442 + $0x2f0] sm:$0xff]
        %v798 = vld [vmem:[%s442 + $0x2f8] sm:$0xff]
        %v799 = vld [vmem:[%s442 + $0x300] sm:$0xff]
        %v800 = vld [vmem:[%s442 + $0x308] sm:$0xff]
        %v801 = vld [vmem:[%s442 + $0x310] sm:$0xff]
        %v802 = vld [vmem:[%s442 + $0x318] sm:$0xff]
        %v803 = vld [vmem:[%s442 + $0x320] sm:$0xff]
        %v804 = vld [vmem:[%s442 + $0x328] sm:$0xff]
        %v805 = vld [vmem:[%s442 + $0x330] sm:$0xff]
        %v806 = vld [vmem:[%s442 + $0x338] sm:$0xff]
        %v807 = vld [vmem:[%s442 + $0x340] sm:$0xff]
        %v808 = vld [vmem:[%s442 + $0x348] sm:$0xff]
        %v809 = vld [vmem:[%s442 + $0x350] sm:$0xff]
        %v810 = vld [vmem:[%s442 + $0x358] sm:$0xff]
        %v811 = vld [vmem:[%s442 + $0x360] sm:$0xff]
        %v812 = vld [vmem:[%s442 + $0x368] sm:$0xff]
        %v813 = vld [vmem:[%s442 + $0x370] sm:$0xff]
        %v814 = vld [vmem:[%s442 + $0x378] sm:$0xff]
        %v815 = vld [vmem:[%s442 + $0x380] sm:$0xff]
        %v816 = vld [vmem:[%s442 + $0x388] sm:$0xff]
        %v817 = vld [vmem:[%s442 + $0x390] sm:$0xff]
        %v818 = vld [vmem:[%s442 + $0x398] sm:$0xff]
        %v819 = vld [vmem:[%s442 + $0x3a0] sm:$0xff]
        %v820 = vld [vmem:[%s442 + $0x3a8] sm:$0xff]
        %v821 = vld [vmem:[%s442 + $0x3b0] sm:$0xff]
        %v822 = vld [vmem:[%s442 + $0x3b8] sm:$0xff]
        %v823 = vld [vmem:[%s442 + $0x3c0] sm:$0xff]
        %v824 = vld [vmem:[%s442 + $0x3c8] sm:$0xff]
        %v825 = vld [vmem:[%s442 + $0x3d0] sm:$0xff]
        %v826 = vld [vmem:[%s442 + $0x3d8] sm:$0xff]
        %v827 = vld [vmem:[%s442 + $0x3e0] sm:$0xff]
        %v828 = vld [vmem:[%s442 + $0x3e8] sm:$0xff]
        %v829 = vld [vmem:[%s442 + $0x3f0] sm:$0xff]
        %v830 = vld [vmem:[%s442 + $0x3f8] sm:$0xff]
        %v831 = vunpack.c.l.bf16 %v703
        %v832 = vunpack.c.h.bf16 %v703
        %v833 = vunpack.c.l.bf16 %v704
        %v834 = vunpack.c.h.bf16 %v704
        %v835 = vunpack.c.l.bf16 %v705
        %v836 = vunpack.c.h.bf16 %v705
        %v837 = vunpack.c.l.bf16 %v706
        %v838 = vunpack.c.h.bf16 %v706
        %v839 = vunpack.c.l.bf16 %v707
        %v840 = vunpack.c.h.bf16 %v707
        %v841 = vunpack.c.l.bf16 %v708
        %v842 = vunpack.c.h.bf16 %v708
        %v843 = vunpack.c.l.bf16 %v709
        %v844 = vunpack.c.h.bf16 %v709
        %v845 = vunpack.c.l.bf16 %v710
        %v846 = vunpack.c.h.bf16 %v710
        %v847 = vunpack.c.l.bf16 %v711
        %v848 = vunpack.c.h.bf16 %v711
        %v849 = vunpack.c.l.bf16 %v712
        %v850 = vunpack.c.h.bf16 %v712
        %v851 = vunpack.c.l.bf16 %v713
        %v852 = vunpack.c.h.bf16 %v713
        %v853 = vunpack.c.l.bf16 %v714
        %v854 = vunpack.c.h.bf16 %v714
        %v855 = vunpack.c.l.bf16 %v715
        %v856 = vunpack.c.h.bf16 %v715
        %v857 = vunpack.c.l.bf16 %v716
        %v858 = vunpack.c.h.bf16 %v716
        %v859 = vunpack.c.l.bf16 %v717
        %v860 = vunpack.c.h.bf16 %v717
        %v861 = vunpack.c.l.bf16 %v718
        %v862 = vunpack.c.h.bf16 %v718
        %v863 = vunpack.c.l.bf16 %v719
        %v864 = vunpack.c.h.bf16 %v719
        %v865 = vunpack.c.l.bf16 %v720
        %v866 = vunpack.c.h.bf16 %v720
        %v867 = vunpack.c.l.bf16 %v721
        %v868 = vunpack.c.h.bf16 %v721
        %v869 = vunpack.c.l.bf16 %v722
        %v870 = vunpack.c.h.bf16 %v722
        %v871 = vunpack.c.l.bf16 %v723
        %v872 = vunpack.c.h.bf16 %v723
        %v873 = vunpack.c.l.bf16 %v724
        %v874 = vunpack.c.h.bf16 %v724
        %v875 = vunpack.c.l.bf16 %v725
        %v876 = vunpack.c.h.bf16 %v725
        %v877 = vunpack.c.l.bf16 %v726
        %v878 = vunpack.c.h.bf16 %v726
        %v879 = vunpack.c.l.bf16 %v727
        %v880 = vunpack.c.h.bf16 %v727
        %v881 = vunpack.c.l.bf16 %v728
        %v882 = vunpack.c.h.bf16 %v728
        %v883 = vunpack.c.l.bf16 %v729
        %v884 = vunpack.c.h.bf16 %v729
        %v885 = vunpack.c.l.bf16 %v730
        %v886 = vunpack.c.h.bf16 %v730
        %v887 = vunpack.c.l.bf16 %v731
        %v888 = vunpack.c.h.bf16 %v731
        %v889 = vunpack.c.l.bf16 %v732
        %v890 = vunpack.c.h.bf16 %v732
        %v891 = vunpack.c.l.bf16 %v733
        %v892 = vunpack.c.h.bf16 %v733
        %v893 = vunpack.c.l.bf16 %v734
        %v894 = vunpack.c.h.bf16 %v734
        %v895 = vunpack.c.l.bf16 %v735
        %v896 = vunpack.c.h.bf16 %v735
        %v897 = vunpack.c.l.bf16 %v736
        %v898 = vunpack.c.h.bf16 %v736
        %v899 = vunpack.c.l.bf16 %v737
        %v900 = vunpack.c.h.bf16 %v737
        %v901 = vunpack.c.l.bf16 %v738
        %v902 = vunpack.c.h.bf16 %v738
        %v903 = vunpack.c.l.bf16 %v739
        %v904 = vunpack.c.h.bf16 %v739
        %v905 = vunpack.c.l.bf16 %v740
        %v906 = vunpack.c.h.bf16 %v740
        %v907 = vunpack.c.l.bf16 %v741
        %v908 = vunpack.c.h.bf16 %v741
        %v909 = vunpack.c.l.bf16 %v742
        %v910 = vunpack.c.h.bf16 %v742
        %v911 = vunpack.c.l.bf16 %v743
        %v912 = vunpack.c.h.bf16 %v743
        %v913 = vunpack.c.l.bf16 %v744
        %v914 = vunpack.c.h.bf16 %v744
        %v915 = vunpack.c.l.bf16 %v745
        %v916 = vunpack.c.h.bf16 %v745
        %v917 = vunpack.c.l.bf16 %v746
        %v918 = vunpack.c.h.bf16 %v746
        %v919 = vunpack.c.l.bf16 %v747
        %v920 = vunpack.c.h.bf16 %v747
        %v921 = vunpack.c.l.bf16 %v748
        %v922 = vunpack.c.h.bf16 %v748
        %v923 = vunpack.c.l.bf16 %v749
        %v924 = vunpack.c.h.bf16 %v749
        %v925 = vunpack.c.l.bf16 %v750
        %v926 = vunpack.c.h.bf16 %v750
        %v927 = vunpack.c.l.bf16 %v751
        %v928 = vunpack.c.h.bf16 %v751
        %v929 = vunpack.c.l.bf16 %v752
        %v930 = vunpack.c.h.bf16 %v752
        %v931 = vunpack.c.l.bf16 %v753
        %v932 = vunpack.c.h.bf16 %v753
        %v933 = vunpack.c.l.bf16 %v754
        %v934 = vunpack.c.h.bf16 %v754
        %v935 = vunpack.c.l.bf16 %v755
        %v936 = vunpack.c.h.bf16 %v755
        %v937 = vunpack.c.l.bf16 %v756
        %v938 = vunpack.c.h.bf16 %v756
        %v939 = vunpack.c.l.bf16 %v757
        %v940 = vunpack.c.h.bf16 %v757
        %v941 = vunpack.c.l.bf16 %v758
        %v942 = vunpack.c.h.bf16 %v758
        %v943 = vunpack.c.l.bf16 %v759
        %v944 = vunpack.c.h.bf16 %v759
        %v945 = vunpack.c.l.bf16 %v760
        %v946 = vunpack.c.h.bf16 %v760
        %v947 = vunpack.c.l.bf16 %v761
        %v948 = vunpack.c.h.bf16 %v761
        %v949 = vunpack.c.l.bf16 %v762
        %v950 = vunpack.c.h.bf16 %v762
        %v951 = vunpack.c.l.bf16 %v763
        %v952 = vunpack.c.h.bf16 %v763
        %v953 = vunpack.c.l.bf16 %v764
        %v954 = vunpack.c.h.bf16 %v764
        %v955 = vunpack.c.l.bf16 %v765
        %v956 = vunpack.c.h.bf16 %v765
        %v957 = vunpack.c.l.bf16 %v766
        %v958 = vunpack.c.h.bf16 %v766
        %v959 = vunpack.c.l.bf16 %v767
        %v960 = vunpack.c.h.bf16 %v767
        %v961 = vunpack.c.l.bf16 %v768
        %v962 = vunpack.c.h.bf16 %v768
        %v963 = vunpack.c.l.bf16 %v769
        %v964 = vunpack.c.h.bf16 %v769
        %v965 = vunpack.c.l.bf16 %v770
        %v966 = vunpack.c.h.bf16 %v770
        %v967 = vunpack.c.l.bf16 %v771
        %v968 = vunpack.c.h.bf16 %v771
        %v969 = vunpack.c.l.bf16 %v772
        %v970 = vunpack.c.h.bf16 %v772
        %v971 = vunpack.c.l.bf16 %v773
        %v972 = vunpack.c.h.bf16 %v773
        %v973 = vunpack.c.l.bf16 %v774
        %v974 = vunpack.c.h.bf16 %v774
        %v975 = vunpack.c.l.bf16 %v775
        %v976 = vunpack.c.h.bf16 %v775
        %v977 = vunpack.c.l.bf16 %v776
        %v978 = vunpack.c.h.bf16 %v776
        %v979 = vunpack.c.l.bf16 %v777
        %v980 = vunpack.c.h.bf16 %v777
        %v981 = vunpack.c.l.bf16 %v778
        %v982 = vunpack.c.h.bf16 %v778
        %v983 = vunpack.c.l.bf16 %v779
        %v984 = vunpack.c.h.bf16 %v779
        %v985 = vunpack.c.l.bf16 %v780
        %v986 = vunpack.c.h.bf16 %v780
        %v987 = vunpack.c.l.bf16 %v781
        %v988 = vunpack.c.h.bf16 %v781
        %v989 = vunpack.c.l.bf16 %v782
        %v990 = vunpack.c.h.bf16 %v782
        %v991 = vunpack.c.l.bf16 %v783
        %v992 = vunpack.c.h.bf16 %v783
        %v993 = vunpack.c.l.bf16 %v784
        %v994 = vunpack.c.h.bf16 %v784
        %v995 = vunpack.c.l.bf16 %v785
        %v996 = vunpack.c.h.bf16 %v785
        %v997 = vunpack.c.l.bf16 %v786
        %v998 = vunpack.c.h.bf16 %v786
        %v999 = vunpack.c.l.bf16 %v787
        %v1000 = vunpack.c.h.bf16 %v787
        %v1001 = vunpack.c.l.bf16 %v788
        %v1002 = vunpack.c.h.bf16 %v788
        %v1003 = vunpack.c.l.bf16 %v789
        %v1004 = vunpack.c.h.bf16 %v789
        %v1005 = vunpack.c.l.bf16 %v790
        %v1006 = vunpack.c.h.bf16 %v790
        %v1007 = vunpack.c.l.bf16 %v791
        %v1008 = vunpack.c.h.bf16 %v791
        %v1009 = vunpack.c.l.bf16 %v792
        %v1010 = vunpack.c.h.bf16 %v792
        %v1011 = vunpack.c.l.bf16 %v793
        %v1012 = vunpack.c.h.bf16 %v793
        %v1013 = vunpack.c.l.bf16 %v794
        %v1014 = vunpack.c.h.bf16 %v794
        %v1015 = vunpack.c.l.bf16 %v795
        %v1016 = vunpack.c.h.bf16 %v795
        %v1017 = vunpack.c.l.bf16 %v796
        %v1018 = vunpack.c.h.bf16 %v796
        %v1019 = vunpack.c.l.bf16 %v797
        %v1020 = vunpack.c.h.bf16 %v797
        %v1021 = vunpack.c.l.bf16 %v798
        %v1022 = vunpack.c.h.bf16 %v798
        %v1023 = vunpack.c.l.bf16 %v799
        %v1024 = vunpack.c.h.bf16 %v799
        %v1025 = vunpack.c.l.bf16 %v800
        %v1026 = vunpack.c.h.bf16 %v800
        %v1027 = vunpack.c.l.bf16 %v801
        %v1028 = vunpack.c.h.bf16 %v801
        %v1029 = vunpack.c.l.bf16 %v802
        %v1030 = vunpack.c.h.bf16 %v802
        %v1031 = vunpack.c.l.bf16 %v803
        %v1032 = vunpack.c.h.bf16 %v803
        %v1033 = vunpack.c.l.bf16 %v804
        %v1034 = vunpack.c.h.bf16 %v804
        %v1035 = vunpack.c.l.bf16 %v805
        %v1036 = vunpack.c.h.bf16 %v805
        %v1037 = vunpack.c.l.bf16 %v806
        %v1038 = vunpack.c.h.bf16 %v806
        %v1039 = vunpack.c.l.bf16 %v807
        %v1040 = vunpack.c.h.bf16 %v807
        %v1041 = vunpack.c.l.bf16 %v808
        %v1042 = vunpack.c.h.bf16 %v808
        %v1043 = vunpack.c.l.bf16 %v809
        %v1044 = vunpack.c.h.bf16 %v809
        %v1045 = vunpack.c.l.bf16 %v810
        %v1046 = vunpack.c.h.bf16 %v810
        %v1047 = vunpack.c.l.bf16 %v811
        %v1048 = vunpack.c.h.bf16 %v811
        %v1049 = vunpack.c.l.bf16 %v812
        %v1050 = vunpack.c.h.bf16 %v812
        %v1051 = vunpack.c.l.bf16 %v813
        %v1052 = vunpack.c.h.bf16 %v813
        %v1053 = vunpack.c.l.bf16 %v814
        %v1054 = vunpack.c.h.bf16 %v814
        %v1055 = vunpack.c.l.bf16 %v815
        %v1056 = vunpack.c.h.bf16 %v815
        %v1057 = vunpack.c.l.bf16 %v816
        %v1058 = vunpack.c.h.bf16 %v816
        %v1059 = vunpack.c.l.bf16 %v817
        %v1060 = vunpack.c.h.bf16 %v817
        %v1061 = vunpack.c.l.bf16 %v818
        %v1062 = vunpack.c.h.bf16 %v818
        %v1063 = vunpack.c.l.bf16 %v819
        %v1064 = vunpack.c.h.bf16 %v819
        %v1065 = vunpack.c.l.bf16 %v820
        %v1066 = vunpack.c.h.bf16 %v820
        %v1067 = vunpack.c.l.bf16 %v821
        %v1068 = vunpack.c.h.bf16 %v821
        %v1069 = vunpack.c.l.bf16 %v822
        %v1070 = vunpack.c.h.bf16 %v822
        %v1071 = vunpack.c.l.bf16 %v823
        %v1072 = vunpack.c.h.bf16 %v823
        %v1073 = vunpack.c.l.bf16 %v824
        %v1074 = vunpack.c.h.bf16 %v824
        %v1075 = vunpack.c.l.bf16 %v825
        %v1076 = vunpack.c.h.bf16 %v825
        %v1077 = vunpack.c.l.bf16 %v826
        %v1078 = vunpack.c.h.bf16 %v826
        %v1079 = vunpack.c.l.bf16 %v827
        %v1080 = vunpack.c.h.bf16 %v827
        %v1081 = vunpack.c.l.bf16 %v828
        %v1082 = vunpack.c.h.bf16 %v828
        %v1083 = vunpack.c.l.bf16 %v829
        %v1084 = vunpack.c.h.bf16 %v829
        %v1085 = vunpack.c.l.bf16 %v830
        %v1086 = vunpack.c.h.bf16 %v830
        %v1087 = vld [vmem:[%s460] sm:$0xff]
        %v1088 = vld [vmem:[%s460 + $0x8] sm:$0xff]
        %v1089 = vld [vmem:[%s460 + $0x10] sm:$0xff]
        %v1090 = vld [vmem:[%s460 + $0x18] sm:$0xff]
        %v1091 = vld [vmem:[%s460 + $0x20] sm:$0xff]
        %v1092 = vld [vmem:[%s460 + $0x28] sm:$0xff]
        %v1093 = vld [vmem:[%s460 + $0x30] sm:$0xff]
        %v1094 = vld [vmem:[%s460 + $0x38] sm:$0xff]
        %v1095 = vld [vmem:[%s460 + $0x40] sm:$0xff]
        %v1096 = vld [vmem:[%s460 + $0x48] sm:$0xff]
        %v1097 = vld [vmem:[%s460 + $0x50] sm:$0xff]
        %v1098 = vld [vmem:[%s460 + $0x58] sm:$0xff]
        %v1099 = vld [vmem:[%s460 + $0x60] sm:$0xff]
        %v1100 = vld [vmem:[%s460 + $0x68] sm:$0xff]
        %v1101 = vld [vmem:[%s460 + $0x70] sm:$0xff]
        %v1102 = vld [vmem:[%s460 + $0x78] sm:$0xff]
        %v1103 = vld [vmem:[%s460 + $0x80] sm:$0xff]
        %v1104 = vld [vmem:[%s460 + $0x88] sm:$0xff]
        %v1105 = vld [vmem:[%s460 + $0x90] sm:$0xff]
        %v1106 = vld [vmem:[%s460 + $0x98] sm:$0xff]
        %v1107 = vld [vmem:[%s460 + $0xa0] sm:$0xff]
        %v1108 = vld [vmem:[%s460 + $0xa8] sm:$0xff]
        %v1109 = vld [vmem:[%s460 + $0xb0] sm:$0xff]
        %v1110 = vld [vmem:[%s460 + $0xb8] sm:$0xff]
        %v1111 = vld [vmem:[%s460 + $0xc0] sm:$0xff]
        %v1112 = vld [vmem:[%s460 + $0xc8] sm:$0xff]
        %v1113 = vld [vmem:[%s460 + $0xd0] sm:$0xff]
        %v1114 = vld [vmem:[%s460 + $0xd8] sm:$0xff]
        %v1115 = vld [vmem:[%s460 + $0xe0] sm:$0xff]
        %v1116 = vld [vmem:[%s460 + $0xe8] sm:$0xff]
        %v1117 = vld [vmem:[%s460 + $0xf0] sm:$0xff]
        %v1118 = vld [vmem:[%s460 + $0xf8] sm:$0xff]
        %v1119 = vld [vmem:[%s460 + $0x100] sm:$0xff]
        %v1120 = vld [vmem:[%s460 + $0x108] sm:$0xff]
        %v1121 = vld [vmem:[%s460 + $0x110] sm:$0xff]
        %v1122 = vld [vmem:[%s460 + $0x118] sm:$0xff]
        %v1123 = vld [vmem:[%s460 + $0x120] sm:$0xff]
        %v1124 = vld [vmem:[%s460 + $0x128] sm:$0xff]
        %v1125 = vld [vmem:[%s460 + $0x130] sm:$0xff]
        %v1126 = vld [vmem:[%s460 + $0x138] sm:$0xff]
        %v1127 = vld [vmem:[%s460 + $0x140] sm:$0xff]
        %v1128 = vld [vmem:[%s460 + $0x148] sm:$0xff]
        %v1129 = vld [vmem:[%s460 + $0x150] sm:$0xff]
        %v1130 = vld [vmem:[%s460 + $0x158] sm:$0xff]
        %v1131 = vld [vmem:[%s460 + $0x160] sm:$0xff]
        %v1132 = vld [vmem:[%s460 + $0x168] sm:$0xff]
        %v1133 = vld [vmem:[%s460 + $0x170] sm:$0xff]
        %v1134 = vld [vmem:[%s460 + $0x178] sm:$0xff]
        %v1135 = vld [vmem:[%s460 + $0x180] sm:$0xff]
        %v1136 = vld [vmem:[%s460 + $0x188] sm:$0xff]
        %v1137 = vld [vmem:[%s460 + $0x190] sm:$0xff]
        %v1138 = vld [vmem:[%s460 + $0x198] sm:$0xff]
        %v1139 = vld [vmem:[%s460 + $0x1a0] sm:$0xff]
        %v1140 = vld [vmem:[%s460 + $0x1a8] sm:$0xff]
        %v1141 = vld [vmem:[%s460 + $0x1b0] sm:$0xff]
        %v1142 = vld [vmem:[%s460 + $0x1b8] sm:$0xff]
        %v1143 = vld [vmem:[%s460 + $0x1c0] sm:$0xff]
        %v1144 = vld [vmem:[%s460 + $0x1c8] sm:$0xff]
        %v1145 = vld [vmem:[%s460 + $0x1d0] sm:$0xff]
        %v1146 = vld [vmem:[%s460 + $0x1d8] sm:$0xff]
        %v1147 = vld [vmem:[%s460 + $0x1e0] sm:$0xff]
        %v1148 = vld [vmem:[%s460 + $0x1e8] sm:$0xff]
        %v1149 = vld [vmem:[%s460 + $0x1f0] sm:$0xff]
        %v1150 = vld [vmem:[%s460 + $0x1f8] sm:$0xff]
        %v1151 = vld [vmem:[%s460 + $0x200] sm:$0xff]
        %v1152 = vld [vmem:[%s460 + $0x208] sm:$0xff]
        %v1153 = vld [vmem:[%s460 + $0x210] sm:$0xff]
        %v1154 = vld [vmem:[%s460 + $0x218] sm:$0xff]
        %v1155 = vld [vmem:[%s460 + $0x220] sm:$0xff]
        %v1156 = vld [vmem:[%s460 + $0x228] sm:$0xff]
        %v1157 = vld [vmem:[%s460 + $0x230] sm:$0xff]
        %v1158 = vld [vmem:[%s460 + $0x238] sm:$0xff]
        %v1159 = vld [vmem:[%s460 + $0x240] sm:$0xff]
        %v1160 = vld [vmem:[%s460 + $0x248] sm:$0xff]
        %v1161 = vld [vmem:[%s460 + $0x250] sm:$0xff]
        %v1162 = vld [vmem:[%s460 + $0x258] sm:$0xff]
        %v1163 = vld [vmem:[%s460 + $0x260] sm:$0xff]
        %v1164 = vld [vmem:[%s460 + $0x268] sm:$0xff]
        %v1165 = vld [vmem:[%s460 + $0x270] sm:$0xff]
        %v1166 = vld [vmem:[%s460 + $0x278] sm:$0xff]
        %v1167 = vld [vmem:[%s460 + $0x280] sm:$0xff]
        %v1168 = vld [vmem:[%s460 + $0x288] sm:$0xff]
        %v1169 = vld [vmem:[%s460 + $0x290] sm:$0xff]
        %v1170 = vld [vmem:[%s460 + $0x298] sm:$0xff]
        %v1171 = vld [vmem:[%s460 + $0x2a0] sm:$0xff]
        %v1172 = vld [vmem:[%s460 + $0x2a8] sm:$0xff]
        %v1173 = vld [vmem:[%s460 + $0x2b0] sm:$0xff]
        %v1174 = vld [vmem:[%s460 + $0x2b8] sm:$0xff]
        %v1175 = vld [vmem:[%s460 + $0x2c0] sm:$0xff]
        %v1176 = vld [vmem:[%s460 + $0x2c8] sm:$0xff]
        %v1177 = vld [vmem:[%s460 + $0x2d0] sm:$0xff]
        %v1178 = vld [vmem:[%s460 + $0x2d8] sm:$0xff]
        %v1179 = vld [vmem:[%s460 + $0x2e0] sm:$0xff]
        %v1180 = vld [vmem:[%s460 + $0x2e8] sm:$0xff]
        %v1181 = vld [vmem:[%s460 + $0x2f0] sm:$0xff]
        %v1182 = vld [vmem:[%s460 + $0x2f8] sm:$0xff]
        %v1183 = vld [vmem:[%s460 + $0x300] sm:$0xff]
        %v1184 = vld [vmem:[%s460 + $0x308] sm:$0xff]
        %v1185 = vld [vmem:[%s460 + $0x310] sm:$0xff]
        %v1186 = vld [vmem:[%s460 + $0x318] sm:$0xff]
        %v1187 = vld [vmem:[%s460 + $0x320] sm:$0xff]
        %v1188 = vld [vmem:[%s460 + $0x328] sm:$0xff]
        %v1189 = vld [vmem:[%s460 + $0x330] sm:$0xff]
        %v1190 = vld [vmem:[%s460 + $0x338] sm:$0xff]
        %v1191 = vld [vmem:[%s460 + $0x340] sm:$0xff]
        %v1192 = vld [vmem:[%s460 + $0x348] sm:$0xff]
        %v1193 = vld [vmem:[%s460 + $0x350] sm:$0xff]
        %v1194 = vld [vmem:[%s460 + $0x358] sm:$0xff]
        %v1195 = vld [vmem:[%s460 + $0x360] sm:$0xff]
        %v1196 = vld [vmem:[%s460 + $0x368] sm:$0xff]
        %v1197 = vld [vmem:[%s460 + $0x370] sm:$0xff]
        %v1198 = vld [vmem:[%s460 + $0x378] sm:$0xff]
        %v1199 = vld [vmem:[%s460 + $0x380] sm:$0xff]
        %v1200 = vld [vmem:[%s460 + $0x388] sm:$0xff]
        %v1201 = vld [vmem:[%s460 + $0x390] sm:$0xff]
        %v1202 = vld [vmem:[%s460 + $0x398] sm:$0xff]
        %v1203 = vld [vmem:[%s460 + $0x3a0] sm:$0xff]
        %v1204 = vld [vmem:[%s460 + $0x3a8] sm:$0xff]
        %v1205 = vld [vmem:[%s460 + $0x3b0] sm:$0xff]
        %v1206 = vld [vmem:[%s460 + $0x3b8] sm:$0xff]
        %v1207 = vld [vmem:[%s460 + $0x3c0] sm:$0xff]
        %v1208 = vld [vmem:[%s460 + $0x3c8] sm:$0xff]
        %v1209 = vld [vmem:[%s460 + $0x3d0] sm:$0xff]
        %v1210 = vld [vmem:[%s460 + $0x3d8] sm:$0xff]
        %v1211 = vld [vmem:[%s460 + $0x3e0] sm:$0xff]
        %v1212 = vld [vmem:[%s460 + $0x3e8] sm:$0xff]
        %v1213 = vld [vmem:[%s460 + $0x3f0] sm:$0xff]
        %v1214 = vld [vmem:[%s460 + $0x3f8] sm:$0xff]
        %v1215 = vunpack.c.l.bf16 %v1087
        %v1216 = vunpack.c.h.bf16 %v1087
        %v1217 = vunpack.c.l.bf16 %v1088
        %v1218 = vunpack.c.h.bf16 %v1088
        %v1219 = vunpack.c.l.bf16 %v1089
        %v1220 = vunpack.c.h.bf16 %v1089
        %v1221 = vunpack.c.l.bf16 %v1090
        %v1222 = vunpack.c.h.bf16 %v1090
        %v1223 = vunpack.c.l.bf16 %v1091
        %v1224 = vunpack.c.h.bf16 %v1091
        %v1225 = vunpack.c.l.bf16 %v1092
        %v1226 = vunpack.c.h.bf16 %v1092
        %v1227 = vunpack.c.l.bf16 %v1093
        %v1228 = vunpack.c.h.bf16 %v1093
        %v1229 = vunpack.c.l.bf16 %v1094
        %v1230 = vunpack.c.h.bf16 %v1094
        %v1231 = vunpack.c.l.bf16 %v1095
        %v1232 = vunpack.c.h.bf16 %v1095
        %v1233 = vunpack.c.l.bf16 %v1096
        %v1234 = vunpack.c.h.bf16 %v1096
        %v1235 = vunpack.c.l.bf16 %v1097
        %v1236 = vunpack.c.h.bf16 %v1097
        %v1237 = vunpack.c.l.bf16 %v1098
        %v1238 = vunpack.c.h.bf16 %v1098
        %v1239 = vunpack.c.l.bf16 %v1099
        %v1240 = vunpack.c.h.bf16 %v1099
        %v1241 = vunpack.c.l.bf16 %v1100
        %v1242 = vunpack.c.h.bf16 %v1100
        %v1243 = vunpack.c.l.bf16 %v1101
        %v1244 = vunpack.c.h.bf16 %v1101
        %v1245 = vunpack.c.l.bf16 %v1102
        %v1246 = vunpack.c.h.bf16 %v1102
        %v1247 = vunpack.c.l.bf16 %v1103
        %v1248 = vunpack.c.h.bf16 %v1103
        %v1249 = vunpack.c.l.bf16 %v1104
        %v1250 = vunpack.c.h.bf16 %v1104
        %v1251 = vunpack.c.l.bf16 %v1105
        %v1252 = vunpack.c.h.bf16 %v1105
        %v1253 = vunpack.c.l.bf16 %v1106
        %v1254 = vunpack.c.h.bf16 %v1106
        %v1255 = vunpack.c.l.bf16 %v1107
        %v1256 = vunpack.c.h.bf16 %v1107
        %v1257 = vunpack.c.l.bf16 %v1108
        %v1258 = vunpack.c.h.bf16 %v1108
        %v1259 = vunpack.c.l.bf16 %v1109
        %v1260 = vunpack.c.h.bf16 %v1109
        %v1261 = vunpack.c.l.bf16 %v1110
        %v1262 = vunpack.c.h.bf16 %v1110
        %v1263 = vunpack.c.l.bf16 %v1111
        %v1264 = vunpack.c.h.bf16 %v1111
        %v1265 = vunpack.c.l.bf16 %v1112
        %v1266 = vunpack.c.h.bf16 %v1112
        %v1267 = vunpack.c.l.bf16 %v1113
        %v1268 = vunpack.c.h.bf16 %v1113
        %v1269 = vunpack.c.l.bf16 %v1114
        %v1270 = vunpack.c.h.bf16 %v1114
        %v1271 = vunpack.c.l.bf16 %v1115
        %v1272 = vunpack.c.h.bf16 %v1115
        %v1273 = vunpack.c.l.bf16 %v1116
        %v1274 = vunpack.c.h.bf16 %v1116
        %v1275 = vunpack.c.l.bf16 %v1117
        %v1276 = vunpack.c.h.bf16 %v1117
        %v1277 = vunpack.c.l.bf16 %v1118
        %v1278 = vunpack.c.h.bf16 %v1118
        %v1279 = vunpack.c.l.bf16 %v1119
        %v1280 = vunpack.c.h.bf16 %v1119
        %v1281 = vunpack.c.l.bf16 %v1120
        %v1282 = vunpack.c.h.bf16 %v1120
        %v1283 = vunpack.c.l.bf16 %v1121
        %v1284 = vunpack.c.h.bf16 %v1121
        %v1285 = vunpack.c.l.bf16 %v1122
        %v1286 = vunpack.c.h.bf16 %v1122
        %v1287 = vunpack.c.l.bf16 %v1123
        %v1288 = vunpack.c.h.bf16 %v1123
        %v1289 = vunpack.c.l.bf16 %v1124
        %v1290 = vunpack.c.h.bf16 %v1124
        %v1291 = vunpack.c.l.bf16 %v1125
        %v1292 = vunpack.c.h.bf16 %v1125
        %v1293 = vunpack.c.l.bf16 %v1126
        %v1294 = vunpack.c.h.bf16 %v1126
        %v1295 = vunpack.c.l.bf16 %v1127
        %v1296 = vunpack.c.h.bf16 %v1127
        %v1297 = vunpack.c.l.bf16 %v1128
        %v1298 = vunpack.c.h.bf16 %v1128
        %v1299 = vunpack.c.l.bf16 %v1129
        %v1300 = vunpack.c.h.bf16 %v1129
        %v1301 = vunpack.c.l.bf16 %v1130
        %v1302 = vunpack.c.h.bf16 %v1130
        %v1303 = vunpack.c.l.bf16 %v1131
        %v1304 = vunpack.c.h.bf16 %v1131
        %v1305 = vunpack.c.l.bf16 %v1132
        %v1306 = vunpack.c.h.bf16 %v1132
        %v1307 = vunpack.c.l.bf16 %v1133
        %v1308 = vunpack.c.h.bf16 %v1133
        %v1309 = vunpack.c.l.bf16 %v1134
        %v1310 = vunpack.c.h.bf16 %v1134
        %v1311 = vunpack.c.l.bf16 %v1135
        %v1312 = vunpack.c.h.bf16 %v1135
        %v1313 = vunpack.c.l.bf16 %v1136
        %v1314 = vunpack.c.h.bf16 %v1136
        %v1315 = vunpack.c.l.bf16 %v1137
        %v1316 = vunpack.c.h.bf16 %v1137
        %v1317 = vunpack.c.l.bf16 %v1138
        %v1318 = vunpack.c.h.bf16 %v1138
        %v1319 = vunpack.c.l.bf16 %v1139
        %v1320 = vunpack.c.h.bf16 %v1139
        %v1321 = vunpack.c.l.bf16 %v1140
        %v1322 = vunpack.c.h.bf16 %v1140
        %v1323 = vunpack.c.l.bf16 %v1141
        %v1324 = vunpack.c.h.bf16 %v1141
        %v1325 = vunpack.c.l.bf16 %v1142
        %v1326 = vunpack.c.h.bf16 %v1142
        %v1327 = vunpack.c.l.bf16 %v1143
        %v1328 = vunpack.c.h.bf16 %v1143
        %v1329 = vunpack.c.l.bf16 %v1144
        %v1330 = vunpack.c.h.bf16 %v1144
        %v1331 = vunpack.c.l.bf16 %v1145
        %v1332 = vunpack.c.h.bf16 %v1145
        %v1333 = vunpack.c.l.bf16 %v1146
        %v1334 = vunpack.c.h.bf16 %v1146
        %v1335 = vunpack.c.l.bf16 %v1147
        %v1336 = vunpack.c.h.bf16 %v1147
        %v1337 = vunpack.c.l.bf16 %v1148
        %v1338 = vunpack.c.h.bf16 %v1148
        %v1339 = vunpack.c.l.bf16 %v1149
        %v1340 = vunpack.c.h.bf16 %v1149
        %v1341 = vunpack.c.l.bf16 %v1150
        %v1342 = vunpack.c.h.bf16 %v1150
        %v1343 = vunpack.c.l.bf16 %v1151
        %v1344 = vunpack.c.h.bf16 %v1151
        %v1345 = vunpack.c.l.bf16 %v1152
        %v1346 = vunpack.c.h.bf16 %v1152
        %v1347 = vunpack.c.l.bf16 %v1153
        %v1348 = vunpack.c.h.bf16 %v1153
        %v1349 = vunpack.c.l.bf16 %v1154
        %v1350 = vunpack.c.h.bf16 %v1154
        %v1351 = vunpack.c.l.bf16 %v1155
        %v1352 = vunpack.c.h.bf16 %v1155
        %v1353 = vunpack.c.l.bf16 %v1156
        %v1354 = vunpack.c.h.bf16 %v1156
        %v1355 = vunpack.c.l.bf16 %v1157
        %v1356 = vunpack.c.h.bf16 %v1157
        %v1357 = vunpack.c.l.bf16 %v1158
        %v1358 = vunpack.c.h.bf16 %v1158
        %v1359 = vunpack.c.l.bf16 %v1159
        %v1360 = vunpack.c.h.bf16 %v1159
        %v1361 = vunpack.c.l.bf16 %v1160
        %v1362 = vunpack.c.h.bf16 %v1160
        %v1363 = vunpack.c.l.bf16 %v1161
        %v1364 = vunpack.c.h.bf16 %v1161
        %v1365 = vunpack.c.l.bf16 %v1162
        %v1366 = vunpack.c.h.bf16 %v1162
        %v1367 = vunpack.c.l.bf16 %v1163
        %v1368 = vunpack.c.h.bf16 %v1163
        %v1369 = vunpack.c.l.bf16 %v1164
        %v1370 = vunpack.c.h.bf16 %v1164
        %v1371 = vunpack.c.l.bf16 %v1165
        %v1372 = vunpack.c.h.bf16 %v1165
        %v1373 = vunpack.c.l.bf16 %v1166
        %v1374 = vunpack.c.h.bf16 %v1166
        %v1375 = vunpack.c.l.bf16 %v1167
        %v1376 = vunpack.c.h.bf16 %v1167
        %v1377 = vunpack.c.l.bf16 %v1168
        %v1378 = vunpack.c.h.bf16 %v1168
        %v1379 = vunpack.c.l.bf16 %v1169
        %v1380 = vunpack.c.h.bf16 %v1169
        %v1381 = vunpack.c.l.bf16 %v1170
        %v1382 = vunpack.c.h.bf16 %v1170
        %v1383 = vunpack.c.l.bf16 %v1171
        %v1384 = vunpack.c.h.bf16 %v1171
        %v1385 = vunpack.c.l.bf16 %v1172
        %v1386 = vunpack.c.h.bf16 %v1172
        %v1387 = vunpack.c.l.bf16 %v1173
        %v1388 = vunpack.c.h.bf16 %v1173
        %v1389 = vunpack.c.l.bf16 %v1174
        %v1390 = vunpack.c.h.bf16 %v1174
        %v1391 = vunpack.c.l.bf16 %v1175
        %v1392 = vunpack.c.h.bf16 %v1175
        %v1393 = vunpack.c.l.bf16 %v1176
        %v1394 = vunpack.c.h.bf16 %v1176
        %v1395 = vunpack.c.l.bf16 %v1177
        %v1396 = vunpack.c.h.bf16 %v1177
        %v1397 = vunpack.c.l.bf16 %v1178
        %v1398 = vunpack.c.h.bf16 %v1178
        %v1399 = vunpack.c.l.bf16 %v1179
        %v1400 = vunpack.c.h.bf16 %v1179
        %v1401 = vunpack.c.l.bf16 %v1180
        %v1402 = vunpack.c.h.bf16 %v1180
        %v1403 = vunpack.c.l.bf16 %v1181
        %v1404 = vunpack.c.h.bf16 %v1181
        %v1405 = vunpack.c.l.bf16 %v1182
        %v1406 = vunpack.c.h.bf16 %v1182
        %v1407 = vunpack.c.l.bf16 %v1183
        %v1408 = vunpack.c.h.bf16 %v1183
        %v1409 = vunpack.c.l.bf16 %v1184
        %v1410 = vunpack.c.h.bf16 %v1184
        %v1411 = vunpack.c.l.bf16 %v1185
        %v1412 = vunpack.c.h.bf16 %v1185
        %v1413 = vunpack.c.l.bf16 %v1186
        %v1414 = vunpack.c.h.bf16 %v1186
        %v1415 = vunpack.c.l.bf16 %v1187
        %v1416 = vunpack.c.h.bf16 %v1187
        %v1417 = vunpack.c.l.bf16 %v1188
        %v1418 = vunpack.c.h.bf16 %v1188
        %v1419 = vunpack.c.l.bf16 %v1189
        %v1420 = vunpack.c.h.bf16 %v1189
        %v1421 = vunpack.c.l.bf16 %v1190
        %v1422 = vunpack.c.h.bf16 %v1190
        %v1423 = vunpack.c.l.bf16 %v1191
        %v1424 = vunpack.c.h.bf16 %v1191
        %v1425 = vunpack.c.l.bf16 %v1192
        %v1426 = vunpack.c.h.bf16 %v1192
        %v1427 = vunpack.c.l.bf16 %v1193
        %v1428 = vunpack.c.h.bf16 %v1193
        %v1429 = vunpack.c.l.bf16 %v1194
        %v1430 = vunpack.c.h.bf16 %v1194
        %v1431 = vunpack.c.l.bf16 %v1195
        %v1432 = vunpack.c.h.bf16 %v1195
        %v1433 = vunpack.c.l.bf16 %v1196
        %v1434 = vunpack.c.h.bf16 %v1196
        %v1435 = vunpack.c.l.bf16 %v1197
        %v1436 = vunpack.c.h.bf16 %v1197
        %v1437 = vunpack.c.l.bf16 %v1198
        %v1438 = vunpack.c.h.bf16 %v1198
        %v1439 = vunpack.c.l.bf16 %v1199
        %v1440 = vunpack.c.h.bf16 %v1199
        %v1441 = vunpack.c.l.bf16 %v1200
        %v1442 = vunpack.c.h.bf16 %v1200
        %v1443 = vunpack.c.l.bf16 %v1201
        %v1444 = vunpack.c.h.bf16 %v1201
        %v1445 = vunpack.c.l.bf16 %v1202
        %v1446 = vunpack.c.h.bf16 %v1202
        %v1447 = vunpack.c.l.bf16 %v1203
        %v1448 = vunpack.c.h.bf16 %v1203
        %v1449 = vunpack.c.l.bf16 %v1204
        %v1450 = vunpack.c.h.bf16 %v1204
        %v1451 = vunpack.c.l.bf16 %v1205
        %v1452 = vunpack.c.h.bf16 %v1205
        %v1453 = vunpack.c.l.bf16 %v1206
        %v1454 = vunpack.c.h.bf16 %v1206
        %v1455 = vunpack.c.l.bf16 %v1207
        %v1456 = vunpack.c.h.bf16 %v1207
        %v1457 = vunpack.c.l.bf16 %v1208
        %v1458 = vunpack.c.h.bf16 %v1208
        %v1459 = vunpack.c.l.bf16 %v1209
        %v1460 = vunpack.c.h.bf16 %v1209
        %v1461 = vunpack.c.l.bf16 %v1210
        %v1462 = vunpack.c.h.bf16 %v1210
        %v1463 = vunpack.c.l.bf16 %v1211
        %v1464 = vunpack.c.h.bf16 %v1211
        %v1465 = vunpack.c.l.bf16 %v1212
        %v1466 = vunpack.c.h.bf16 %v1212
        %v1467 = vunpack.c.l.bf16 %v1213
        %v1468 = vunpack.c.h.bf16 %v1213
        %v1469 = vunpack.c.l.bf16 %v1214
        %v1470 = vunpack.c.h.bf16 %v1214
        %v1471 = vld [vmem:[%s451] sm:$0xff]
        %v1473 = vlaneseq
        %v1474 = vshrl.u32 %v1473, 7
        %v1475 = vsub.s32 0, %v1474
        %v1476 = vrot.slane %v1471, %v1475
        %v1477 = vlaneseq
        %v1478 = vshrl.u32 %v1477, 7
        %v1479 = vsub.s32 1, %v1478
        %v1480 = vrot.slane %v1471, %v1479
        %v1481 = vlaneseq
        %v1482 = vshrl.u32 %v1481, 7
        %v1483 = vsub.s32 2, %v1482
        %v1484 = vrot.slane %v1471, %v1483
        %v1485 = vlaneseq
        %v1486 = vshrl.u32 %v1485, 7
        %v1487 = vsub.s32 3, %v1486
        %v1488 = vrot.slane %v1471, %v1487
        %v1489 = vlaneseq
        %v1490 = vshrl.u32 %v1489, 7
        %v1491 = vsub.s32 4, %v1490
        %v1492 = vrot.slane %v1471, %v1491
        %v1493 = vlaneseq
        %v1494 = vshrl.u32 %v1493, 7
        %v1495 = vsub.s32 5, %v1494
        %v1496 = vrot.slane %v1471, %v1495
        %v1497 = vlaneseq
        %v1498 = vshrl.u32 %v1497, 7
        %v1499 = vsub.s32 6, %v1498
        %v1500 = vrot.slane %v1471, %v1499
        %v1501 = vlaneseq
        %v1502 = vshrl.u32 %v1501, 7
        %v1503 = vsub.s32 7, %v1502
        %v1504 = vrot.slane %v1471, %v1503
        %1513 = vmatprep.subr.mxu0 %v832
        %1514 = vmatpush1.msra.mxu0 %v831
        %1515 = vmatprep.subr.mxu0 %v840
        %1516 = vmatpush1.msra.mxu0 %v839
        %1517 = vmatprep.subr.mxu0 %v848
        %1518 = vmatpush1.msra.mxu0 %v847
        %1519 = vmatprep.subr.mxu0 %v856
        %1520 = vmatpush1.msra.mxu0 %v855
        %1521 = vmatprep.subr.mxu0 %v864
        %1522 = vmatpush1.msra.mxu0 %v863
        %1523 = vmatprep.subr.mxu0 %v872
        %1524 = vmatpush1.msra.mxu0 %v871
        %1525 = vmatprep.subr.mxu0 %v880
        %1526 = vmatpush1.msra.mxu0 %v879
        %1527 = vmatprep.subr.mxu0 %v888
        %1528 = vmatpush1.msra.mxu0 %v887
        %1529 = vmatprep.subr.mxu0 %v896
        %1530 = vmatpush1.msra.mxu0 %v895
        %1531 = vmatprep.subr.mxu0 %v904
        %1532 = vmatpush1.msra.mxu0 %v903
        %1533 = vmatprep.subr.mxu0 %v912
        %1534 = vmatpush1.msra.mxu0 %v911
        %1535 = vmatprep.subr.mxu0 %v920
        %1536 = vmatpush1.msra.mxu0 %v919
        %1537 = vmatprep.subr.mxu0 %v928
        %1538 = vmatpush1.msra.mxu0 %v927
        %1539 = vmatprep.subr.mxu0 %v936
        %1540 = vmatpush1.msra.mxu0 %v935
        %1541 = vmatprep.subr.mxu0 %v944
        %1542 = vmatpush1.msra.mxu0 %v943
        %1543 = vmatprep.subr.mxu0 %v952
        %1544 = vmatpush1.msra.mxu0 %v951
        %1545 = vmatprep.subr.mxu0 %v960
        %1546 = vmatpush1.msra.mxu0 %v959
        %1547 = vmatprep.subr.mxu0 %v968
        %1548 = vmatpush1.msra.mxu0 %v967
        %1549 = vmatprep.subr.mxu0 %v976
        %1550 = vmatpush1.msra.mxu0 %v975
        %1551 = vmatprep.subr.mxu0 %v984
        %1552 = vmatpush1.msra.mxu0 %v983
        %1553 = vmatprep.subr.mxu0 %v992
        %1554 = vmatpush1.msra.mxu0 %v991
        %1555 = vmatprep.subr.mxu0 %v1000
        %1556 = vmatpush1.msra.mxu0 %v999
        %1557 = vmatprep.subr.mxu0 %v1008
        %1558 = vmatpush1.msra.mxu0 %v1007
        %1559 = vmatprep.subr.mxu0 %v1016
        %1560 = vmatpush1.msra.mxu0 %v1015
        %1561 = vmatprep.subr.mxu0 %v1024
        %1562 = vmatpush1.msra.mxu0 %v1023
        %1563 = vmatprep.subr.mxu0 %v1032
        %1564 = vmatpush1.msra.mxu0 %v1031
        %1565 = vmatprep.subr.mxu0 %v1040
        %1566 = vmatpush1.msra.mxu0 %v1039
        %1567 = vmatprep.subr.mxu0 %v1048
        %1568 = vmatpush1.msra.mxu0 %v1047
        %1569 = vmatprep.subr.mxu0 %v1056
        %1570 = vmatpush1.msra.mxu0 %v1055
        %1571 = vmatprep.subr.mxu0 %v1064
        %1572 = vmatpush1.msra.mxu0 %v1063
        %1573 = vmatprep.subr.mxu0 %v1072
        %1574 = vmatpush1.msra.mxu0 %v1071
        %1575 = vmatprep.subr.mxu0 %v1080
        %1576 = vmatpush1.msra.mxu0 %v1079
        %1577 = vmatprep.mubr.f32.mxu0 %v621
        %1578 = vmatmul.mubr.f32.gmra.mrb[0].mxu0 %v620
        %v1579 = vpop.f32.mrb[0].mxu0
        %v1580 = vadd.f32 %v1476, %v1579
        %v1581 = vpop.f32.mrb[0].mxu0
        %v1582 = vadd.f32 %v1480, %v1581
        %1583 = vmatprep.mubr.f32.mxu0 %v702
        %1584 = vmatmul.mubr.f32.gmra.mrb[0].mxu0 %v701
        %v1585 = vpop.f32.mrb[0].mxu0
        %v1586 = vadd.f32 %v1476, %v1585
        %v1587 = vpop.f32.mrb[0].mxu0
        %v1588 = vadd.f32 %v1480, %v1587
        %1589 = vdwg.mxu0
        %1590 = vmatprep.subr.mxu0 %v834
        %1591 = vmatpush1.msra.mxu0 %v833
        %1592 = vmatprep.subr.mxu0 %v842
        %1593 = vmatpush1.msra.mxu0 %v841
        %1594 = vmatprep.subr.mxu0 %v850
        %1595 = vmatpush1.msra.mxu0 %v849
        %1596 = vmatprep.subr.mxu0 %v858
        %1597 = vmatpush1.msra.mxu0 %v857
        %1598 = vmatprep.subr.mxu0 %v866
        %1599 = vmatpush1.msra.mxu0 %v865
        %1600 = vmatprep.subr.mxu0 %v874
        %1601 = vmatpush1.msra.mxu0 %v873
        %1602 = vmatprep.subr.mxu0 %v882
        %1603 = vmatpush1.msra.mxu0 %v881
        %1604 = vmatprep.subr.mxu0 %v890
        %1605 = vmatpush1.msra.mxu0 %v889
        %1606 = vmatprep.subr.mxu0 %v898
        %1607 = vmatpush1.msra.mxu0 %v897
        %1608 = vmatprep.subr.mxu0 %v906
        %1609 = vmatpush1.msra.mxu0 %v905
        %1610 = vmatprep.subr.mxu0 %v914
        %1611 = vmatpush1.msra.mxu0 %v913
        %1612 = vmatprep.subr.mxu0 %v922
        %1613 = vmatpush1.msra.mxu0 %v921
        %1614 = vmatprep.subr.mxu0 %v930
        %1615 = vmatpush1.msra.mxu0 %v929
        %1616 = vmatprep.subr.mxu0 %v938
        %1617 = vmatpush1.msra.mxu0 %v937
        %1618 = vmatprep.subr.mxu0 %v946
        %1619 = vmatpush1.msra.mxu0 %v945
        %1620 = vmatprep.subr.mxu0 %v954
        %1621 = vmatpush1.msra.mxu0 %v953
        %1622 = vmatprep.subr.mxu0 %v962
        %1623 = vmatpush1.msra.mxu0 %v961
        %1624 = vmatprep.subr.mxu0 %v970
        %1625 = vmatpush1.msra.mxu0 %v969
        %1626 = vmatprep.subr.mxu0 %v978
        %1627 = vmatpush1.msra.mxu0 %v977
        %1628 = vmatprep.subr.mxu0 %v986
        %1629 = vmatpush1.msra.mxu0 %v985
        %1630 = vmatprep.subr.mxu0 %v994
        %1631 = vmatpush1.msra.mxu0 %v993
        %1632 = vmatprep.subr.mxu0 %v1002
        %1633 = vmatpush1.msra.mxu0 %v1001
        %1634 = vmatprep.subr.mxu0 %v1010
        %1635 = vmatpush1.msra.mxu0 %v1009
        %1636 = vmatprep.subr.mxu0 %v1018
        %1637 = vmatpush1.msra.mxu0 %v1017
        %1638 = vmatprep.subr.mxu0 %v1026
        %1639 = vmatpush1.msra.mxu0 %v1025
        %1640 = vmatprep.subr.mxu0 %v1034
        %1641 = vmatpush1.msra.mxu0 %v1033
        %1642 = vmatprep.subr.mxu0 %v1042
        %1643 = vmatpush1.msra.mxu0 %v1041
        %1644 = vmatprep.subr.mxu0 %v1050
        %1645 = vmatpush1.msra.mxu0 %v1049
        %1646 = vmatprep.subr.mxu0 %v1058
        %1647 = vmatpush1.msra.mxu0 %v1057
        %1648 = vmatprep.subr.mxu0 %v1066
        %1649 = vmatpush1.msra.mxu0 %v1065
        %1650 = vmatprep.subr.mxu0 %v1074
        %1651 = vmatpush1.msra.mxu0 %v1073
        %1652 = vmatprep.subr.mxu0 %v1082
        %1653 = vmatpush1.msra.mxu0 %v1081
        %1654 = vmatprep.mubr.f32.mxu0 %v621
        %1655 = vmatmul.mubr.f32.gmra.mrb[0].mxu0 %v620
        %v1656 = vpop.f32.mrb[0].mxu0
        %v1657 = vadd.f32 %v1484, %v1656
        %v1658 = vpop.f32.mrb[0].mxu0
        %v1659 = vadd.f32 %v1488, %v1658
        %1660 = vmatprep.mubr.f32.mxu0 %v702
        %1661 = vmatmul.mubr.f32.gmra.mrb[0].mxu0 %v701
        %v1662 = vpop.f32.mrb[0].mxu0
        %v1663 = vadd.f32 %v1484, %v1662
        %v1664 = vpop.f32.mrb[0].mxu0
        %v1665 = vadd.f32 %v1488, %v1664
        %1666 = vdwg.mxu0
        %1667 = vmatprep.subr.mxu0 %v836
        %1668 = vmatpush1.msra.mxu0 %v835
        %1669 = vmatprep.subr.mxu0 %v844
        %1670 = vmatpush1.msra.mxu0 %v843
        %1671 = vmatprep.subr.mxu0 %v852
        %1672 = vmatpush1.msra.mxu0 %v851
        %1673 = vmatprep.subr.mxu0 %v860
        %1674 = vmatpush1.msra.mxu0 %v859
        %1675 = vmatprep.subr.mxu0 %v868
        %1676 = vmatpush1.msra.mxu0 %v867
        %1677 = vmatprep.subr.mxu0 %v876
        %1678 = vmatpush1.msra.mxu0 %v875
        %1679 = vmatprep.subr.mxu0 %v884
        %1680 = vmatpush1.msra.mxu0 %v883
        %1681 = vmatprep.subr.mxu0 %v892
        %1682 = vmatpush1.msra.mxu0 %v891
        %1683 = vmatprep.subr.mxu0 %v900
        %1684 = vmatpush1.msra.mxu0 %v899
        %1685 = vmatprep.subr.mxu0 %v908
        %1686 = vmatpush1.msra.mxu0 %v907
        %1687 = vmatprep.subr.mxu0 %v916
        %1688 = vmatpush1.msra.mxu0 %v915
        %1689 = vmatprep.subr.mxu0 %v924
        %1690 = vmatpush1.msra.mxu0 %v923
        %1691 = vmatprep.subr.mxu0 %v932
        %1692 = vmatpush1.msra.mxu0 %v931
        %1693 = vmatprep.subr.mxu0 %v940
        %1694 = vmatpush1.msra.mxu0 %v939
        %1695 = vmatprep.subr.mxu0 %v948
        %1696 = vmatpush1.msra.mxu0 %v947
        %1697 = vmatprep.subr.mxu0 %v956
        %1698 = vmatpush1.msra.mxu0 %v955
        %1699 = vmatprep.subr.mxu0 %v964
        %1700 = vmatpush1.msra.mxu0 %v963
        %1701 = vmatprep.subr.mxu0 %v972
        %1702 = vmatpush1.msra.mxu0 %v971
        %1703 = vmatprep.subr.mxu0 %v980
        %1704 = vmatpush1.msra.mxu0 %v979
        %1705 = vmatprep.subr.mxu0 %v988
        %1706 = vmatpush1.msra.mxu0 %v987
        %1707 = vmatprep.subr.mxu0 %v996
        %1708 = vmatpush1.msra.mxu0 %v995
        %1709 = vmatprep.subr.mxu0 %v1004
        %1710 = vmatpush1.msra.mxu0 %v1003
        %1711 = vmatprep.subr.mxu0 %v1012
        %1712 = vmatpush1.msra.mxu0 %v1011
        %1713 = vmatprep.subr.mxu0 %v1020
        %1714 = vmatpush1.msra.mxu0 %v1019
        %1715 = vmatprep.subr.mxu0 %v1028
        %1716 = vmatpush1.msra.mxu0 %v1027
        %1717 = vmatprep.subr.mxu0 %v1036
        %1718 = vmatpush1.msra.mxu0 %v1035
        %1719 = vmatprep.subr.mxu0 %v1044
        %1720 = vmatpush1.msra.mxu0 %v1043
        %1721 = vmatprep.subr.mxu0 %v1052
        %1722 = vmatpush1.msra.mxu0 %v1051
        %1723 = vmatprep.subr.mxu0 %v1060
        %1724 = vmatpush1.msra.mxu0 %v1059
        %1725 = vmatprep.subr.mxu0 %v1068
        %1726 = vmatpush1.msra.mxu0 %v1067
        %1727 = vmatprep.subr.mxu0 %v1076
        %1728 = vmatpush1.msra.mxu0 %v1075
        %1729 = vmatprep.subr.mxu0 %v1084
        %1730 = vmatpush1.msra.mxu0 %v1083
        %1731 = vmatprep.mubr.f32.mxu0 %v621
        %1732 = vmatmul.mubr.f32.gmra.mrb[0].mxu0 %v620
        %v1733 = vpop.f32.mrb[0].mxu0
        %v1734 = vadd.f32 %v1492, %v1733
        %v1735 = vpop.f32.mrb[0].mxu0
        %v1736 = vadd.f32 %v1496, %v1735
        %1737 = vmatprep.mubr.f32.mxu0 %v702
        %1738 = vmatmul.mubr.f32.gmra.mrb[0].mxu0 %v701
        %v1739 = vpop.f32.mrb[0].mxu0
        %v1740 = vadd.f32 %v1492, %v1739
        %v1741 = vpop.f32.mrb[0].mxu0
        %v1742 = vadd.f32 %v1496, %v1741
        %1743 = vdwg.mxu0
        %1744 = vmatprep.subr.mxu0 %v838
        %1745 = vmatpush1.msra.mxu0 %v837
        %1746 = vmatprep.subr.mxu0 %v846
        %1747 = vmatpush1.msra.mxu0 %v845
        %1748 = vmatprep.subr.mxu0 %v854
        %1749 = vmatpush1.msra.mxu0 %v853
        %1750 = vmatprep.subr.mxu0 %v862
        %1751 = vmatpush1.msra.mxu0 %v861
        %1752 = vmatprep.subr.mxu0 %v870
        %1753 = vmatpush1.msra.mxu0 %v869
        %1754 = vmatprep.subr.mxu0 %v878
        %1755 = vmatpush1.msra.mxu0 %v877
        %1756 = vmatprep.subr.mxu0 %v886
        %1757 = vmatpush1.msra.mxu0 %v885
        %1758 = vmatprep.subr.mxu0 %v894
        %1759 = vmatpush1.msra.mxu0 %v893
        %1760 = vmatprep.subr.mxu0 %v902
        %1761 = vmatpush1.msra.mxu0 %v901
        %1762 = vmatprep.subr.mxu0 %v910
        %1763 = vmatpush1.msra.mxu0 %v909
        %1764 = vmatprep.subr.mxu0 %v918
        %1765 = vmatpush1.msra.mxu0 %v917
        %1766 = vmatprep.subr.mxu0 %v926
        %1767 = vmatpush1.msra.mxu0 %v925
        %1768 = vmatprep.subr.mxu0 %v934
        %1769 = vmatpush1.msra.mxu0 %v933
        %1770 = vmatprep.subr.mxu0 %v942
        %1771 = vmatpush1.msra.mxu0 %v941
        %1772 = vmatprep.subr.mxu0 %v950
        %1773 = vmatpush1.msra.mxu0 %v949
        %1774 = vmatprep.subr.mxu0 %v958
        %1775 = vmatpush1.msra.mxu0 %v957
        %1776 = vmatprep.subr.mxu0 %v966
        %1777 = vmatpush1.msra.mxu0 %v965
        %1778 = vmatprep.subr.mxu0 %v974
        %1779 = vmatpush1.msra.mxu0 %v973
        %1780 = vmatprep.subr.mxu0 %v982
        %1781 = vmatpush1.msra.mxu0 %v981
        %1782 = vmatprep.subr.mxu0 %v990
        %1783 = vmatpush1.msra.mxu0 %v989
        %1784 = vmatprep.subr.mxu0 %v998
        %1785 = vmatpush1.msra.mxu0 %v997
        %1786 = vmatprep.subr.mxu0 %v1006
        %1787 = vmatpush1.msra.mxu0 %v1005
        %1788 = vmatprep.subr.mxu0 %v1014
        %1789 = vmatpush1.msra.mxu0 %v1013
        %1790 = vmatprep.subr.mxu0 %v1022
        %1791 = vmatpush1.msra.mxu0 %v1021
        %1792 = vmatprep.subr.mxu0 %v1030
        %1793 = vmatpush1.msra.mxu0 %v1029
        %1794 = vmatprep.subr.mxu0 %v1038
        %1795 = vmatpush1.msra.mxu0 %v1037
        %1796 = vmatprep.subr.mxu0 %v1046
        %1797 = vmatpush1.msra.mxu0 %v1045
        %1798 = vmatprep.subr.mxu0 %v1054
        %1799 = vmatpush1.msra.mxu0 %v1053
        %1800 = vmatprep.subr.mxu0 %v1062
        %1801 = vmatpush1.msra.mxu0 %v1061
        %1802 = vmatprep.subr.mxu0 %v1070
        %1803 = vmatpush1.msra.mxu0 %v1069
        %1804 = vmatprep.subr.mxu0 %v1078
        %1805 = vmatpush1.msra.mxu0 %v1077
        %1806 = vmatprep.subr.mxu0 %v1086
        %1807 = vmatpush1.msra.mxu0 %v1085
        %1808 = vmatprep.mubr.f32.mxu0 %v621
        %1809 = vmatmul.mubr.f32.gmra.mrb[0].mxu0 %v620
        %v1810 = vpop.f32.mrb[0].mxu0
        %v1811 = vadd.f32 %v1500, %v1810
        %v1812 = vpop.f32.mrb[0].mxu0
        %v1813 = vadd.f32 %v1504, %v1812
        %1814 = vmatprep.mubr.f32.mxu0 %v702
        %1815 = vmatmul.mubr.f32.gmra.mrb[0].mxu0 %v701
        %v1816 = vpop.f32.mrb[0].mxu0
        %v1817 = vadd.f32 %v1500, %v1816
        %v1818 = vpop.f32.mrb[0].mxu0
        %v1819 = vadd.f32 %v1504, %v1818
        %1820 = vdwg.mxu0
        %v1821 = vmax.f32 %v1580, 0.0
        %v1822 = vmax.f32 %v1582, 0.0
        %v1823 = vmax.f32 %v1657, 0.0
        %v1824 = vmax.f32 %v1659, 0.0
        %v1825 = vmax.f32 %v1734, 0.0
        %v1826 = vmax.f32 %v1736, 0.0
        %v1827 = vmax.f32 %v1811, 0.0
        %v1828 = vmax.f32 %v1813, 0.0
        %v1829 = vmax.f32 %v1586, 0.0
        %v1830 = vmax.f32 %v1588, 0.0
        %v1831 = vmax.f32 %v1663, 0.0
        %v1832 = vmax.f32 %v1665, 0.0
        %v1833 = vmax.f32 %v1740, 0.0
        %v1834 = vmax.f32 %v1742, 0.0
        %v1835 = vmax.f32 %v1817, 0.0
        %v1836 = vmax.f32 %v1819, 0.0
        %v1837 = vld [vmem:[%s469] sm:$0x3]
        %v1839 = vlaneseq
        %v1840 = vshrl.u32 %v1839, 7
        %v1841 = vsub.s32 0, %v1840
        %v1842 = vrot.slane %v1837, %v1841
        %v1843 = vlaneseq
        %v1844 = vshrl.u32 %v1843, 7
        %v1845 = vsub.s32 1, %v1844
        %v1846 = vrot.slane %v1837, %v1845
        %1849 = vmatprep.subr.mxu0 %v1216
        %1850 = vmatpush1.msra.mxu0 %v1215
        %1851 = vmatprep.subr.mxu0 %v1218
        %1852 = vmatpush1.msra.mxu0 %v1217
        %1853 = vmatprep.subr.mxu0 %v1220
        %1854 = vmatpush1.msra.mxu0 %v1219
        %1855 = vmatprep.subr.mxu0 %v1222
        %1856 = vmatpush1.msra.mxu0 %v1221
        %1857 = vmatprep.subr.mxu0 %v1224
        %1858 = vmatpush1.msra.mxu0 %v1223
        %1859 = vmatprep.subr.mxu0 %v1226
        %1860 = vmatpush1.msra.mxu0 %v1225
        %1861 = vmatprep.subr.mxu0 %v1228
        %1862 = vmatpush1.msra.mxu0 %v1227
        %1863 = vmatprep.subr.mxu0 %v1230
        %1864 = vmatpush1.msra.mxu0 %v1229
        %1865 = vmatprep.subr.mxu0 %v1232
        %1866 = vmatpush1.msra.mxu0 %v1231
        %1867 = vmatprep.subr.mxu0 %v1234
        %1868 = vmatpush1.msra.mxu0 %v1233
        %1869 = vmatprep.subr.mxu0 %v1236
        %1870 = vmatpush1.msra.mxu0 %v1235
        %1871 = vmatprep.subr.mxu0 %v1238
        %1872 = vmatpush1.msra.mxu0 %v1237
        %1873 = vmatprep.subr.mxu0 %v1240
        %1874 = vmatpush1.msra.mxu0 %v1239
        %1875 = vmatprep.subr.mxu0 %v1242
        %1876 = vmatpush1.msra.mxu0 %v1241
        %1877 = vmatprep.subr.mxu0 %v1244
        %1878 = vmatpush1.msra.mxu0 %v1243
        %1879 = vmatprep.subr.mxu0 %v1246
        %1880 = vmatpush1.msra.mxu0 %v1245
        %1881 = vmatprep.subr.mxu0 %v1248
        %1882 = vmatpush1.msra.mxu0 %v1247
        %1883 = vmatprep.subr.mxu0 %v1250
        %1884 = vmatpush1.msra.mxu0 %v1249
        %1885 = vmatprep.subr.mxu0 %v1252
        %1886 = vmatpush1.msra.mxu0 %v1251
        %1887 = vmatprep.subr.mxu0 %v1254
        %1888 = vmatpush1.msra.mxu0 %v1253
        %1889 = vmatprep.subr.mxu0 %v1256
        %1890 = vmatpush1.msra.mxu0 %v1255
        %1891 = vmatprep.subr.mxu0 %v1258
        %1892 = vmatpush1.msra.mxu0 %v1257
        %1893 = vmatprep.subr.mxu0 %v1260
        %1894 = vmatpush1.msra.mxu0 %v1259
        %1895 = vmatprep.subr.mxu0 %v1262
        %1896 = vmatpush1.msra.mxu0 %v1261
        %1897 = vmatprep.subr.mxu0 %v1264
        %1898 = vmatpush1.msra.mxu0 %v1263
        %1899 = vmatprep.subr.mxu0 %v1266
        %1900 = vmatpush1.msra.mxu0 %v1265
        %1901 = vmatprep.subr.mxu0 %v1268
        %1902 = vmatpush1.msra.mxu0 %v1267
        %1903 = vmatprep.subr.mxu0 %v1270
        %1904 = vmatpush1.msra.mxu0 %v1269
        %1905 = vmatprep.subr.mxu0 %v1272
        %1906 = vmatpush1.msra.mxu0 %v1271
        %1907 = vmatprep.subr.mxu0 %v1274
        %1908 = vmatpush1.msra.mxu0 %v1273
        %1909 = vmatprep.subr.mxu0 %v1276
        %1910 = vmatpush1.msra.mxu0 %v1275
        %1911 = vmatprep.subr.mxu0 %v1278
        %1912 = vmatpush1.msra.mxu0 %v1277
        %1913 = vmatprep.mubr.f32.mxu0 %v1822
        %1914 = vmatmul.mubr.f32.gmra.mrb[0].mxu0 %v1821
        %v1915 = vpop.f32.mrb[0].mxu0
        %v1916 = vadd.f32 %v1842, %v1915
        %v1917 = vpop.f32.mrb[0].mxu0
        %v1918 = vadd.f32 %v1846, %v1917
        %1919 = vmatprep.mubr.f32.mxu0 %v1830
        %1920 = vmatmul.mubr.f32.gmra.mrb[0].mxu0 %v1829
        %v1921 = vpop.f32.mrb[0].mxu0
        %v1922 = vadd.f32 %v1842, %v1921
        %v1923 = vpop.f32.mrb[0].mxu0
        %v1924 = vadd.f32 %v1846, %v1923
        %1925 = vdwg.mxu0
        %1926 = vmatprep.subr.mxu0 %v1280
        %1927 = vmatpush1.msra.mxu0 %v1279
        %1928 = vmatprep.subr.mxu0 %v1282
        %1929 = vmatpush1.msra.mxu0 %v1281
        %1930 = vmatprep.subr.mxu0 %v1284
        %1931 = vmatpush1.msra.mxu0 %v1283
        %1932 = vmatprep.subr.mxu0 %v1286
        %1933 = vmatpush1.msra.mxu0 %v1285
        %1934 = vmatprep.subr.mxu0 %v1288
        %1935 = vmatpush1.msra.mxu0 %v1287
        %1936 = vmatprep.subr.mxu0 %v1290
        %1937 = vmatpush1.msra.mxu0 %v1289
        %1938 = vmatprep.subr.mxu0 %v1292
        %1939 = vmatpush1.msra.mxu0 %v1291
        %1940 = vmatprep.subr.mxu0 %v1294
        %1941 = vmatpush1.msra.mxu0 %v1293
        %1942 = vmatprep.subr.mxu0 %v1296
        %1943 = vmatpush1.msra.mxu0 %v1295
        %1944 = vmatprep.subr.mxu0 %v1298
        %1945 = vmatpush1.msra.mxu0 %v1297
        %1946 = vmatprep.subr.mxu0 %v1300
        %1947 = vmatpush1.msra.mxu0 %v1299
        %1948 = vmatprep.subr.mxu0 %v1302
        %1949 = vmatpush1.msra.mxu0 %v1301
        %1950 = vmatprep.subr.mxu0 %v1304
        %1951 = vmatpush1.msra.mxu0 %v1303
        %1952 = vmatprep.subr.mxu0 %v1306
        %1953 = vmatpush1.msra.mxu0 %v1305
        %1954 = vmatprep.subr.mxu0 %v1308
        %1955 = vmatpush1.msra.mxu0 %v1307
        %1956 = vmatprep.subr.mxu0 %v1310
        %1957 = vmatpush1.msra.mxu0 %v1309
        %1958 = vmatprep.subr.mxu0 %v1312
        %1959 = vmatpush1.msra.mxu0 %v1311
        %1960 = vmatprep.subr.mxu0 %v1314
        %1961 = vmatpush1.msra.mxu0 %v1313
        %1962 = vmatprep.subr.mxu0 %v1316
        %1963 = vmatpush1.msra.mxu0 %v1315
        %1964 = vmatprep.subr.mxu0 %v1318
        %1965 = vmatpush1.msra.mxu0 %v1317
        %1966 = vmatprep.subr.mxu0 %v1320
        %1967 = vmatpush1.msra.mxu0 %v1319
        %1968 = vmatprep.subr.mxu0 %v1322
        %1969 = vmatpush1.msra.mxu0 %v1321
        %1970 = vmatprep.subr.mxu0 %v1324
        %1971 = vmatpush1.msra.mxu0 %v1323
        %1972 = vmatprep.subr.mxu0 %v1326
        %1973 = vmatpush1.msra.mxu0 %v1325
        %1974 = vmatprep.subr.mxu0 %v1328
        %1975 = vmatpush1.msra.mxu0 %v1327
        %1976 = vmatprep.subr.mxu0 %v1330
        %1977 = vmatpush1.msra.mxu0 %v1329
        %1978 = vmatprep.subr.mxu0 %v1332
        %1979 = vmatpush1.msra.mxu0 %v1331
        %1980 = vmatprep.subr.mxu0 %v1334
        %1981 = vmatpush1.msra.mxu0 %v1333
        %1982 = vmatprep.subr.mxu0 %v1336
        %1983 = vmatpush1.msra.mxu0 %v1335
        %1984 = vmatprep.subr.mxu0 %v1338
        %1985 = vmatpush1.msra.mxu0 %v1337
        %1986 = vmatprep.subr.mxu0 %v1340
        %1987 = vmatpush1.msra.mxu0 %v1339
        %1988 = vmatprep.subr.mxu0 %v1342
        %1989 = vmatpush1.msra.mxu0 %v1341
        %1990 = vmatprep.mubr.f32.mxu0 %v1824
        %1991 = vmatmul.mubr.f32.gmra.mrb[0].mxu0 %v1823
        %v1992 = vpop.f32.mrb[0].mxu0
        %v1993 = vadd.f32 %v1916, %v1992
        %v1994 = vpop.f32.mrb[0].mxu0
        %v1995 = vadd.f32 %v1918, %v1994
        %1996 = vmatprep.mubr.f32.mxu0 %v1832
        %1997 = vmatmul.mubr.f32.gmra.mrb[0].mxu0 %v1831
        %v1998 = vpop.f32.mrb[0].mxu0
        %v1999 = vadd.f32 %v1922, %v1998
        %v2000 = vpop.f32.mrb[0].mxu0
        %v2001 = vadd.f32 %v1924, %v2000
        %2002 = vdwg.mxu0
        %2003 = vmatprep.subr.mxu0 %v1344
        %2004 = vmatpush1.msra.mxu0 %v1343
        %2005 = vmatprep.subr.mxu0 %v1346
        %2006 = vmatpush1.msra.mxu0 %v1345
        %2007 = vmatprep.subr.mxu0 %v1348
        %2008 = vmatpush1.msra.mxu0 %v1347
        %2009 = vmatprep.subr.mxu0 %v1350
        %2010 = vmatpush1.msra.mxu0 %v1349
        %2011 = vmatprep.subr.mxu0 %v1352
        %2012 = vmatpush1.msra.mxu0 %v1351
        %2013 = vmatprep.subr.mxu0 %v1354
        %2014 = vmatpush1.msra.mxu0 %v1353
        %2015 = vmatprep.subr.mxu0 %v1356
        %2016 = vmatpush1.msra.mxu0 %v1355
        %2017 = vmatprep.subr.mxu0 %v1358
        %2018 = vmatpush1.msra.mxu0 %v1357
        %2019 = vmatprep.subr.mxu0 %v1360
        %2020 = vmatpush1.msra.mxu0 %v1359
        %2021 = vmatprep.subr.mxu0 %v1362
        %2022 = vmatpush1.msra.mxu0 %v1361
        %2023 = vmatprep.subr.mxu0 %v1364
        %2024 = vmatpush1.msra.mxu0 %v1363
        %2025 = vmatprep.subr.mxu0 %v1366
        %2026 = vmatpush1.msra.mxu0 %v1365
        %2027 = vmatprep.subr.mxu0 %v1368
        %2028 = vmatpush1.msra.mxu0 %v1367
        %2029 = vmatprep.subr.mxu0 %v1370
        %2030 = vmatpush1.msra.mxu0 %v1369
        %2031 = vmatprep.subr.mxu0 %v1372
        %2032 = vmatpush1.msra.mxu0 %v1371
        %2033 = vmatprep.subr.mxu0 %v1374
        %2034 = vmatpush1.msra.mxu0 %v1373
        %2035 = vmatprep.subr.mxu0 %v1376
        %2036 = vmatpush1.msra.mxu0 %v1375
        %2037 = vmatprep.subr.mxu0 %v1378
        %2038 = vmatpush1.msra.mxu0 %v1377
        %2039 = vmatprep.subr.mxu0 %v1380
        %2040 = vmatpush1.msra.mxu0 %v1379
        %2041 = vmatprep.subr.mxu0 %v1382
        %2042 = vmatpush1.msra.mxu0 %v1381
        %2043 = vmatprep.subr.mxu0 %v1384
        %2044 = vmatpush1.msra.mxu0 %v1383
        %2045 = vmatprep.subr.mxu0 %v1386
        %2046 = vmatpush1.msra.mxu0 %v1385
        %2047 = vmatprep.subr.mxu0 %v1388
        %2048 = vmatpush1.msra.mxu0 %v1387
        %2049 = vmatprep.subr.mxu0 %v1390
        %2050 = vmatpush1.msra.mxu0 %v1389
        %2051 = vmatprep.subr.mxu0 %v1392
        %2052 = vmatpush1.msra.mxu0 %v1391
        %2053 = vmatprep.subr.mxu0 %v1394
        %2054 = vmatpush1.msra.mxu0 %v1393
        %2055 = vmatprep.subr.mxu0 %v1396
        %2056 = vmatpush1.msra.mxu0 %v1395
        %2057 = vmatprep.subr.mxu0 %v1398
        %2058 = vmatpush1.msra.mxu0 %v1397
        %2059 = vmatprep.subr.mxu0 %v1400
        %2060 = vmatpush1.msra.mxu0 %v1399
        %2061 = vmatprep.subr.mxu0 %v1402
        %2062 = vmatpush1.msra.mxu0 %v1401
        %2063 = vmatprep.subr.mxu0 %v1404
        %2064 = vmatpush1.msra.mxu0 %v1403
        %2065 = vmatprep.subr.mxu0 %v1406
        %2066 = vmatpush1.msra.mxu0 %v1405
        %2067 = vmatprep.mubr.f32.mxu0 %v1826
        %2068 = vmatmul.mubr.f32.gmra.mrb[0].mxu0 %v1825
        %v2069 = vpop.f32.mrb[0].mxu0
        %v2070 = vadd.f32 %v1993, %v2069
        %v2071 = vpop.f32.mrb[0].mxu0
        %v2072 = vadd.f32 %v1995, %v2071
        %2073 = vmatprep.mubr.f32.mxu0 %v1834
        %2074 = vmatmul.mubr.f32.gmra.mrb[0].mxu0 %v1833
        %v2075 = vpop.f32.mrb[0].mxu0
        %v2076 = vadd.f32 %v1999, %v2075
        %v2077 = vpop.f32.mrb[0].mxu0
        %v2078 = vadd.f32 %v2001, %v2077
        %2079 = vdwg.mxu0
        %2080 = vmatprep.subr.mxu0 %v1408
        %2081 = vmatpush1.msra.mxu0 %v1407
        %2082 = vmatprep.subr.mxu0 %v1410
        %2083 = vmatpush1.msra.mxu0 %v1409
        %2084 = vmatprep.subr.mxu0 %v1412
        %2085 = vmatpush1.msra.mxu0 %v1411
        %2086 = vmatprep.subr.mxu0 %v1414
        %2087 = vmatpush1.msra.mxu0 %v1413
        %2088 = vmatprep.subr.mxu0 %v1416
        %2089 = vmatpush1.msra.mxu0 %v1415
        %2090 = vmatprep.subr.mxu0 %v1418
        %2091 = vmatpush1.msra.mxu0 %v1417
        %2092 = vmatprep.subr.mxu0 %v1420
        %2093 = vmatpush1.msra.mxu0 %v1419
        %2094 = vmatprep.subr.mxu0 %v1422
        %2095 = vmatpush1.msra.mxu0 %v1421
        %2096 = vmatprep.subr.mxu0 %v1424
        %2097 = vmatpush1.msra.mxu0 %v1423
        %2098 = vmatprep.subr.mxu0 %v1426
        %2099 = vmatpush1.msra.mxu0 %v1425
        %2100 = vmatprep.subr.mxu0 %v1428
        %2101 = vmatpush1.msra.mxu0 %v1427
        %2102 = vmatprep.subr.mxu0 %v1430
        %2103 = vmatpush1.msra.mxu0 %v1429
        %2104 = vmatprep.subr.mxu0 %v1432
        %2105 = vmatpush1.msra.mxu0 %v1431
        %2106 = vmatprep.subr.mxu0 %v1434
        %2107 = vmatpush1.msra.mxu0 %v1433
        %2108 = vmatprep.subr.mxu0 %v1436
        %2109 = vmatpush1.msra.mxu0 %v1435
        %2110 = vmatprep.subr.mxu0 %v1438
        %2111 = vmatpush1.msra.mxu0 %v1437
        %2112 = vmatprep.subr.mxu0 %v1440
        %2113 = vmatpush1.msra.mxu0 %v1439
        %2114 = vmatprep.subr.mxu0 %v1442
        %2115 = vmatpush1.msra.mxu0 %v1441
        %2116 = vmatprep.subr.mxu0 %v1444
        %2117 = vmatpush1.msra.mxu0 %v1443
        %2118 = vmatprep.subr.mxu0 %v1446
        %2119 = vmatpush1.msra.mxu0 %v1445
        %2120 = vmatprep.subr.mxu0 %v1448
        %2121 = vmatpush1.msra.mxu0 %v1447
        %2122 = vmatprep.subr.mxu0 %v1450
        %2123 = vmatpush1.msra.mxu0 %v1449
        %2124 = vmatprep.subr.mxu0 %v1452
        %2125 = vmatpush1.msra.mxu0 %v1451
        %2126 = vmatprep.subr.mxu0 %v1454
        %2127 = vmatpush1.msra.mxu0 %v1453
        %2128 = vmatprep.subr.mxu0 %v1456
        %2129 = vmatpush1.msra.mxu0 %v1455
        %2130 = vmatprep.subr.mxu0 %v1458
        %2131 = vmatpush1.msra.mxu0 %v1457
        %2132 = vmatprep.subr.mxu0 %v1460
        %2133 = vmatpush1.msra.mxu0 %v1459
        %2134 = vmatprep.subr.mxu0 %v1462
        %2135 = vmatpush1.msra.mxu0 %v1461
        %2136 = vmatprep.subr.mxu0 %v1464
        %2137 = vmatpush1.msra.mxu0 %v1463
        %2138 = vmatprep.subr.mxu0 %v1466
        %2139 = vmatpush1.msra.mxu0 %v1465
        %2140 = vmatprep.subr.mxu0 %v1468
        %2141 = vmatpush1.msra.mxu0 %v1467
        %2142 = vmatprep.subr.mxu0 %v1470
        %2143 = vmatpush1.msra.mxu0 %v1469
        %2144 = vmatprep.mubr.f32.mxu0 %v1828
        %2145 = vmatmul.mubr.f32.gmra.mrb[0].mxu0 %v1827
        %v2146 = vpop.f32.mrb[0].mxu0
        %v2147 = vadd.f32 %v2070, %v2146
        %v2148 = vpop.f32.mrb[0].mxu0
        %v2149 = vadd.f32 %v2072, %v2148
        %2150 = vmatprep.mubr.f32.mxu0 %v1836
        %2151 = vmatmul.mubr.f32.gmra.mrb[0].mxu0 %v1835
        %v2152 = vpop.f32.mrb[0].mxu0
        %v2153 = vadd.f32 %v2076, %v2152
        %v2154 = vpop.f32.mrb[0].mxu0
        %v2155 = vadd.f32 %v2078, %v2154
        %2156 = vdwg.mxu0
        %v2157 = vmax.f32 %v2147, 0.0
        %v2158 = vmax.f32 %v2149, 0.0
        %v2159 = vmax.f32 %v2153, 0.0
        %v2160 = vmax.f32 %v2155, 0.0
        %v2161 = vld [vmem:[#allocation2] sm:$0xff]
        %v2162 = vld [vmem:[#allocation2 + $0x8] sm:$0xff]
        %v2163 = vld [vmem:[#allocation2 + $0x10] sm:$0xff]
        %v2164 = vld [vmem:[#allocation2 + $0x18] sm:$0xff]
        %v2165 = vadd.f32 %v2161, %v2157
        %v2166 = vadd.f32 %v2162, %v2158
        %v2167 = vadd.f32 %v2163, %v2159
        %v2168 = vadd.f32 %v2164, %v2160
        %2169 = vst [vmem:[#allocation2] sm:$0xff] %v2165
        %2170 = vst [vmem:[#allocation2 + $0x8] sm:$0xff] %v2166
        %2171 = vst [vmem:[#allocation2 + $0x10] sm:$0xff] %v2167
        %2172 = vst [vmem:[#allocation2 + $0x18] sm:$0xff] %v2168
        %p2173 = scmp.eq.s32.totalorder %s29, 5
        // Predicated region
        $region119: #{vpn_forward.1} parent=89 // pred_check
          %p2174 = pneg %p2173
        $region120: #{vpn_forward.1} parent=89 // pred_check_branch
          %2176 = sbr.rel (%p2174) target = $region122
        $region121: #{vpn_forward.1} parent=89 // pred_region
          %v2177 = vld [vmem:[#allocation11] sm:$0xf]
          %v2178 = vld [vmem:[%s8] sm:$0xf]
          %v2179 = vld [vmem:[#allocation2] sm:$0xff]
          %v2180 = vld [vmem:[#allocation2 + $0x8] sm:$0xff]
          %2182 = vset.pattern.permute.xlu0 0
          %2183 = vperm.xlu0 %2182, %v2178
          %v2184 = vpop.permute.xlu0 %2183
          %vm2186 = vcmask 64512
          %v2188 = vsel %vm2186, %v2177, 0
          %2190 = vmatprep.subr.mxu0 %v2180
          %2191 = vmatpush1.msra.mxu0 %v2179
          %2192 = vmatprep.subr.mxu0 0.0
          %2193 = vmatpush1.msra.mxu0 0.0
          %2194 = vmatprep.subr.mxu0 0.0
          %2195 = vmatpush1.msra.mxu0 0.0
          %2196 = vmatprep.subr.mxu0 0.0
          %2197 = vmatpush1.msra.mxu0 0.0
          %2198 = vmatprep.subr.mxu0 0.0
          %2199 = vmatpush1.msra.mxu0 0.0
          %2200 = vmatprep.subr.mxu0 0.0
          %2201 = vmatpush1.msra.mxu0 0.0
          %2202 = vmatprep.subr.mxu0 0.0
          %2203 = vmatpush1.msra.mxu0 0.0
          %2204 = vmatprep.subr.mxu0 0.0
          %2205 = vmatpush1.msra.mxu0 0.0
          %2206 = vmatprep.subr.mxu0 0.0
          %2207 = vmatpush1.msra.mxu0 0.0
          %2208 = vmatprep.subr.mxu0 0.0
          %2209 = vmatpush1.msra.mxu0 0.0
          %2210 = vmatprep.subr.mxu0 0.0
          %2211 = vmatpush1.msra.mxu0 0.0
          %2212 = vmatprep.subr.mxu0 0.0
          %2213 = vmatpush1.msra.mxu0 0.0
          %2214 = vmatprep.subr.mxu0 0.0
          %2215 = vmatpush1.msra.mxu0 0.0
          %2216 = vmatprep.subr.mxu0 0.0
          %2217 = vmatpush1.msra.mxu0 0.0
          %2218 = vmatprep.subr.mxu0 0.0
          %2219 = vmatpush1.msra.mxu0 0.0
          %2220 = vmatprep.subr.mxu0 0.0
          %2221 = vmatpush1.msra.mxu0 0.0
          %2222 = vmatprep.subr.mxu0 0.0
          %2223 = vmatpush1.msra.mxu0 0.0
          %2224 = vmatprep.subr.mxu0 0.0
          %2225 = vmatpush1.msra.mxu0 0.0
          %2226 = vmatprep.subr.mxu0 0.0
          %2227 = vmatpush1.msra.mxu0 0.0
          %2228 = vmatprep.subr.mxu0 0.0
          %2229 = vmatpush1.msra.mxu0 0.0
          %2230 = vmatprep.subr.mxu0 0.0
          %2231 = vmatpush1.msra.mxu0 0.0
          %2232 = vmatprep.subr.mxu0 0.0
          %2233 = vmatpush1.msra.mxu0 0.0
          %2234 = vmatprep.subr.mxu0 0.0
          %2235 = vmatpush1.msra.mxu0 0.0
          %2236 = vmatprep.subr.mxu0 0.0
          %2237 = vmatpush1.msra.mxu0 0.0
          %2238 = vmatprep.subr.mxu0 0.0
          %2239 = vmatpush1.msra.mxu0 0.0
          %2240 = vmatprep.subr.mxu0 0.0
          %2241 = vmatpush1.msra.mxu0 0.0
          %2242 = vmatprep.subr.mxu0 0.0
          %2243 = vmatpush1.msra.mxu0 0.0
          %2244 = vmatprep.subr.mxu0 0.0
          %2245 = vmatpush1.msra.mxu0 0.0
          %2246 = vmatprep.subr.mxu0 0.0
          %2247 = vmatpush1.msra.mxu0 0.0
          %2248 = vmatprep.subr.mxu0 0.0
          %2249 = vmatpush1.msra.mxu0 0.0
          %2250 = vmatprep.subr.mxu0 0.0
          %2251 = vmatpush1.msra.mxu0 0.0
          %2252 = vmatprep.subr.mxu0 0.0
          %2253 = vmatpush1.msra.mxu0 0.0
          %2254 = vmatprep.mubr.f32.mxu0 0.0
          %2255 = vmatmul.mubr.f32.gmra.mrb[0].mxu0 %v2188
          %v2256 = vpop.f32.mrb[0].mxu0
          %v2257 = vadd.f32 %v2184, %v2256
          %v2258 = vpop.f32.mrb[0].mxu0
          %v2259 = vadd.f32 %v2184, %v2258
          %2260 = vdwg.mxu0
          %v2263 = vcombine.low %v2257, %v2259
          %2265 = vst [vmem:[%s9] sm:$0xff] %v2263
          %v2266 = vld [vmem:[#allocation2 + $0x10] sm:$0xff]
          %v2267 = vld [vmem:[#allocation2 + $0x18] sm:$0xff]
          %2268 = vmatprep.subr.mxu0 %v2267
          %2269 = vmatpush1.msra.mxu0 %v2266
          %2270 = vmatprep.subr.mxu0 0.0
          %2271 = vmatpush1.msra.mxu0 0.0
          %2272 = vmatprep.subr.mxu0 0.0
          %2273 = vmatpush1.msra.mxu0 0.0
          %2274 = vmatprep.subr.mxu0 0.0
          %2275 = vmatpush1.msra.mxu0 0.0
          %2276 = vmatprep.subr.mxu0 0.0
          %2277 = vmatpush1.msra.mxu0 0.0
          %2278 = vmatprep.subr.mxu0 0.0
          %2279 = vmatpush1.msra.mxu0 0.0
          %2280 = vmatprep.subr.mxu0 0.0
          %2281 = vmatpush1.msra.mxu0 0.0
          %2282 = vmatprep.subr.mxu0 0.0
          %2283 = vmatpush1.msra.mxu0 0.0
          %2284 = vmatprep.subr.mxu0 0.0
          %2285 = vmatpush1.msra.mxu0 0.0
          %2286 = vmatprep.subr.mxu0 0.0
          %2287 = vmatpush1.msra.mxu0 0.0
          %2288 = vmatprep.subr.mxu0 0.0
          %2289 = vmatpush1.msra.mxu0 0.0
          %2290 = vmatprep.subr.mxu0 0.0
          %2291 = vmatpush1.msra.mxu0 0.0
          %2292 = vmatprep.subr.mxu0 0.0
          %2293 = vmatpush1.msra.mxu0 0.0
          %2294 = vmatprep.subr.mxu0 0.0
          %2295 = vmatpush1.msra.mxu0 0.0
          %2296 = vmatprep.subr.mxu0 0.0
          %2297 = vmatpush1.msra.mxu0 0.0
          %2298 = vmatprep.subr.mxu0 0.0
          %2299 = vmatpush1.msra.mxu0 0.0
          %2300 = vmatprep.subr.mxu0 0.0
          %2301 = vmatpush1.msra.mxu0 0.0
          %2302 = vmatprep.subr.mxu0 0.0
          %2303 = vmatpush1.msra.mxu0 0.0
          %2304 = vmatprep.subr.mxu0 0.0
          %2305 = vmatpush1.msra.mxu0 0.0
          %2306 = vmatprep.subr.mxu0 0.0
          %2307 = vmatpush1.msra.mxu0 0.0
          %2308 = vmatprep.subr.mxu0 0.0
          %2309 = vmatpush1.msra.mxu0 0.0
          %2310 = vmatprep.subr.mxu0 0.0
          %2311 = vmatpush1.msra.mxu0 0.0
          %2312 = vmatprep.subr.mxu0 0.0
          %2313 = vmatpush1.msra.mxu0 0.0
          %2314 = vmatprep.subr.mxu0 0.0
          %2315 = vmatpush1.msra.mxu0 0.0
          %2316 = vmatprep.subr.mxu0 0.0
          %2317 = vmatpush1.msra.mxu0 0.0
          %2318 = vmatprep.subr.mxu0 0.0
          %2319 = vmatpush1.msra.mxu0 0.0
          %2320 = vmatprep.subr.mxu0 0.0
          %2321 = vmatpush1.msra.mxu0 0.0
          %2322 = vmatprep.subr.mxu0 0.0
          %2323 = vmatpush1.msra.mxu0 0.0
          %2324 = vmatprep.subr.mxu0 0.0
          %2325 = vmatpush1.msra.mxu0 0.0
          %2326 = vmatprep.subr.mxu0 0.0
          %2327 = vmatpush1.msra.mxu0 0.0
          %2328 = vmatprep.subr.mxu0 0.0
          %2329 = vmatpush1.msra.mxu0 0.0
          %2330 = vmatprep.subr.mxu0 0.0
          %2331 = vmatpush1.msra.mxu0 0.0
          %2332 = vmatprep.mubr.f32.mxu0 0.0
          %2333 = vmatmul.mubr.f32.gmra.mrb[0].mxu0 %v2188
          %v2334 = vpop.f32.mrb[0].mxu0
          %v2335 = vadd.f32 %v2184, %v2334
          %v2336 = vpop.f32.mrb[0].mxu0
          %v2337 = vadd.f32 %v2184, %v2336
          %2338 = vdwg.mxu0
          %v2341 = vcombine.low %v2335, %v2337
          %s2343 = scalar_lea.vmem %s9, 8
          %2344 = vst [vmem:[%s2343] sm:$0xff] %v2341
        $region122: #{vpn_forward.1} parent=89 // pred_fallthru
          _
        // Predicated region
        $region123: #{vpn_forward.1} parent=89 // pred_check
          %p2345 = pneg %p256
        $region124: #{vpn_forward.1} parent=89 // pred_check_branch
          %2347 = sbr.rel (%p2345) target = $region126
        $region125: #{vpn_forward.1} parent=89 // pred_region
          _
        $region126: #{vpn_forward.1} parent=89 // pred_fallthru
          _
        // Predicated region
        $region127: #{vpn_forward.1} parent=89 // pred_check
          %p2348 = pneg %p256
        $region128: #{vpn_forward.1} parent=89 // pred_check_branch
          %2350 = sbr.rel (%p2348) target = $region130
        $region129: #{vpn_forward.1} parent=89 // pred_region
          _
        $region130: #{vpn_forward.1} parent=89 // pred_fallthru
          _
      $region90: #{vpn_forward.1} parent=5 // pred_fallthru
        _
      %p2351 = scmp.le.s32.totalorder 2, %s24
      // Predicated region
      $region131: #{vpn_forward.1} parent=5 // pred_check
        %p2352 = pneg %p2351
      $region132: #{vpn_forward.1} parent=5 // pred_check_branch
        %2354 = sbr.rel (%p2352) target = $region134
      $region133: #{vpn_forward.1} parent=5 // pred_region
        %s2355 = ssub.s32 %s24, 2
      $region134: #{vpn_forward.1} parent=5 // pred_fallthru
        _
    $region6: #{vpn_forward.1} parent=1 // loop_footer
      %s28 = sadd.s32 1, %s24
    $region7: #{vpn_forward.1} parent=1 // loop_footer_branch
      %23 = sbr.rel target = $region3
    $region8: #{vpn_forward.1} parent=1 // loop_exit
      _
    %2356 = vsyncpa [#allocation5], 1
    %s2357 = scalar_lea.sflag [#allocation5], 1
    %2358 = vsyncpa %s2357, 1
    %2359 = vsyncpa [#allocation7], 1
    %s2360 = scalar_lea.sflag [#allocation7], 1
    %2361 = vsyncpa %s2360, 1
    %2362 = vsyncpa [#allocation10], 1
    %s2363 = scalar_lea.sflag [#allocation10], 1
    %2364 = vsyncpa %s2363, 1

</llo_original>
